<compile_context>
chip_gen: v7x
topology: tpu7x:2x2x1
jax: 0.10.0
libtpu: 0.0.40
codegen_flags: <defaults>
</compile_context>

<pallas_src>
import functools
import math

import jax
import jax.numpy as jnp
from jax import lax
from jax.experimental import pallas as pl
from jax.experimental.pallas import tpu as pltpu


def _round_up(x, m):
    return (x + m - 1) // m * m


def _pick_tile(hw, candidates=(512, 256, 128)):
    for t in candidates:
        if hw >= t and hw % t == 0:
            return t
    return hw


# ---------------------------------------------------------------------------
# Kernel 1: GroupNorm(1, C) + qkv 1x1 conv, head-major padded output.
# ---------------------------------------------------------------------------
def _norm_qkv_kernel(x_ref, gnw_ref, gnb_ref, wqkv_ref, bqkv_ref,
                     q_ref, k_ref, v_ref, *, n_real, g, eps):
    x = x_ref[0]                                     # [HW, Cp] f32 (pad chans = 0)
    # Fused single-pass stats; zero-padded channels contribute nothing to the
    # sums, and we divide by the real element count only.
    s1 = jnp.sum(x)
    s2 = jnp.sum(x * x)
    inv_n = 1.0 / float(n_real)
    mean = s1 * inv_n
    var = s2 * inv_n - mean * mean
    xn = (x - mean) * lax.rsqrt(var + eps)
    # gn_weight / gn_bias are zero on padded lanes -> padded channels return to 0.
    xn = xn * gnw_ref[...] + gnb_ref[...]
    qkv = jnp.dot(xn.astype(jnp.bfloat16), wqkv_ref[...],
                  preferred_element_type=jnp.float32) + bqkv_ref[...]
    # Column layout of wqkv: [q(0:g) | k(g:2g) | v(2g:3g)], each head at a
    # 128-aligned offset; the d**-0.25 scale is already folded into q and k.
    q_ref[0] = qkv[:, 0 * g:1 * g].astype(q_ref.dtype)
    k_ref[0] = qkv[:, 1 * g:2 * g].astype(k_ref.dtype)
    v_ref[0] = qkv[:, 2 * g:3 * g].astype(v_ref.dtype)


# ---------------------------------------------------------------------------
# Kernel 2: flash attention over KV tiles + out 1x1 conv + residual add.
# ---------------------------------------------------------------------------
def _attn_out_kernel(q_ref, k_ref, v_ref, x_ref, wout_ref, bout_ref, o_ref,
                     acc_sc, m_sc, l_sc, *, n_head, dp):
    kt = pl.program_id(2)

    @pl.when(kt == 0)
    def _():
        m_sc[...] = jnp.full_like(m_sc, -jnp.inf)
        l_sc[...] = jnp.zeros_like(l_sc)
        acc_sc[...] = jnp.zeros_like(acc_sc)

    qb = q_ref[0]                                    # [tq,  G] bf16
    kb = k_ref[0]                                    # [tkv, G] bf16
    vb = v_ref[0]                                    # [tkv, G] bf16

    for h in range(n_head):                          # static unroll; 128-aligned slices
        lo, hi = h * dp, (h + 1) * dp
        q = qb[:, lo:hi]                             # [tq,  dp]
        k = kb[:, lo:hi]                             # [tkv, dp]
        v = vb[:, lo:hi]                             # [tkv, dp]
        # q @ k^T contracting last axes directly (no materialized transpose).
        s = lax.dot_general(q, k, dimension_numbers=(((1,), (1,)), ((), ())),
                            preferred_element_type=jnp.float32)   # [tq, tkv]
        m_prev = m_sc[h]                                           # [tq, 1]
        m_new = jnp.maximum(m_prev, jnp.max(s, axis=-1, keepdims=True))
        alpha = jnp.exp(m_prev - m_new)
        p = jnp.exp(s - m_new)
        l_sc[h] = alpha * l_sc[h] + jnp.sum(p, axis=-1, keepdims=True)
        acc_sc[:, lo:hi] = alpha * acc_sc[:, lo:hi] + jnp.dot(
            p.astype(jnp.bfloat16), v, preferred_element_type=jnp.float32)
        m_sc[h] = m_new

    @pl.when(kt == pl.num_programs(2) - 1)
    def _():
        for h in range(n_head):
            lo, hi = h * dp, (h + 1) * dp
            inv_l = pl.reciprocal(l_sc[h], approx=True)            # EUP vrcp
            acc_sc[:, lo:hi] = acc_sc[:, lo:hi] * inv_l
        y = acc_sc[...].astype(jnp.bfloat16)                       # [tq, G]
        out = jnp.dot(y, wout_ref[...], preferred_element_type=jnp.float32)
        out = out + bout_ref[...] + x_ref[0]                       # bias + residual
        o_ref[0] = out.astype(o_ref.dtype)


# ---------------------------------------------------------------------------
# Wrapper
# ---------------------------------------------------------------------------
def self_attention_2d(x_nchw, params, *, n_head=1, eps=1e-5,
                      block_q=None, block_kv=None):
    """x_nchw: [N, C, H, W] float32. Returns [N, C, H, W]."""
    n, c, h, w = x_nchw.shape
    assert c % n_head == 0
    hw = h * w
    d = c // n_head
    dp = _round_up(d, 128)       # head dim padded to full 128-lane registers
    cp = _round_up(c, 128)       # channel dim padded lane-dense
    g = n_head * dp
    scale = float(d) ** (-0.25)

    tq = block_q or _pick_tile(hw)
    tkv = block_kv or _pick_tile(hw)
    assert hw % tq == 0 and hw % tkv == 0
    nqt, nkt = hw // tq, hw // tkv

    f32, bf16 = jnp.float32, jnp.bfloat16

    # glue: NCHW -> [N, HW, Cp] (channels last, zero-padded lanes)
    x_tok = jnp.transpose(x_nchw, (0, 2, 3, 1)).reshape(n, hw, c).astype(f32)
    x_tok = jnp.pad(x_tok, ((0, 0), (0, 0), (0, cp - c)))

    # GroupNorm affine, zero-padded so padded channels normalize to 0.
    gnw = jnp.pad(params["gn_weight"].astype(f32), (0, cp - c)).reshape(1, cp)
    gnb = jnp.pad(params["gn_bias"].astype(f32), (0, cp - c)).reshape(1, cp)

    # qkv weight -> [Cp, 3*G] head-major packed, q/k scaled by d**-0.25.
    wqkv = params["qkv_weight"].reshape(3 * c, c).astype(f32).T        # [C, 3C]
    wqkv = wqkv.reshape(c, 3, n_head, d)
    sc3 = jnp.array([scale, scale, 1.0], f32).reshape(1, 3, 1, 1)
    wqkv = wqkv * sc3
    wqkv = jnp.pad(wqkv, ((0, cp - c), (0, 0), (0, 0), (0, dp - d)))
    wqkv = wqkv.reshape(cp, 3 * g).astype(bf16)

    bqkv = params["qkv_bias"].reshape(3, n_head, d).astype(f32) * sc3.reshape(3, 1, 1)
    bqkv = jnp.pad(bqkv, ((0, 0), (0, 0), (0, dp - d))).reshape(1, 3 * g)

    # out weight -> [G, Cp] (rows = head-major padded y dims, cols = out chans).
    wout = params["out_weight"].reshape(c, c).astype(f32).T            # [C_in, C_out]
    wout = wout.reshape(n_head, d, c)
    wout = jnp.pad(wout, ((0, 0), (0, dp - d), (0, cp - c))).reshape(g, cp).astype(bf16)
    bout = jnp.pad(params["out_bias"].astype(f32), (0, cp - c)).reshape(1, cp)

    vmem_limit = 48 * 1024 * 1024   # sized for v7x (64 MiB physical VMEM)

    # ---- kernel 1: GroupNorm + qkv projection (grid over batch) ----
    k1 = functools.partial(_norm_qkv_kernel, n_real=hw * c, g=g, eps=eps)
    qkv_cost = pl.CostEstimate(
        flops=2 * n * hw * cp * 3 * g,
        transcendentals=n,
        bytes_accessed=4 * n * hw * cp + 2 * cp * 3 * g + 3 * 2 * n * hw * g)
    q_all, k_all, v_all = pl.pallas_call(
        k1,
        out_shape=(jax.ShapeDtypeStruct((n, hw, g), bf16),
                   jax.ShapeDtypeStruct((n, hw, g), bf16),
                   jax.ShapeDtypeStruct((n, hw, g), bf16)),
        grid_spec=pltpu.PrefetchScalarGridSpec(
            num_scalar_prefetch=0,
            grid=(n,),
            in_specs=[
                pl.BlockSpec((1, hw, cp), lambda i: (i, 0, 0)),
                pl.BlockSpec((1, cp), lambda i: (0, 0)),
                pl.BlockSpec((1, cp), lambda i: (0, 0)),
                pl.BlockSpec((cp, 3 * g), lambda i: (0, 0)),
                pl.BlockSpec((1, 3 * g), lambda i: (0, 0)),
            ],
            out_specs=[
                pl.BlockSpec((1, hw, g), lambda i: (i, 0, 0)),
                pl.BlockSpec((1, hw, g), lambda i: (i, 0, 0)),
                pl.BlockSpec((1, hw, g), lambda i: (i, 0, 0)),
            ]),
        compiler_params=pltpu.CompilerParams(
            dimension_semantics=("parallel",),
            vmem_limit_bytes=vmem_limit),
        cost_estimate=qkv_cost,
    )(x_tok, gnw, gnb, wqkv, bqkv)

    # ---- kernel 2: flash attention + out proj + residual ----
    k2 = functools.partial(_attn_out_kernel, n_head=n_head, dp=dp)
    attn_cost = pl.CostEstimate(
        flops=4 * n * n_head * hw * hw * dp + 2 * n * hw * g * cp,
        transcendentals=n * n_head * hw * hw,
        bytes_accessed=3 * 2 * n * hw * g + 2 * 4 * n * hw * cp + 2 * g * cp)
    out_tok = pl.pallas_call(
        k2,
        out_shape=jax.ShapeDtypeStruct((n, hw, cp), f32),
        grid_spec=pltpu.PrefetchScalarGridSpec(
            num_scalar_prefetch=0,
            grid=(n, nqt, nkt),
            in_specs=[
                pl.BlockSpec((1, tq, g), lambda b, qi, ki: (b, qi, 0)),
                pl.BlockSpec((1, tkv, g), lambda b, qi, ki: (b, ki, 0)),
                pl.BlockSpec((1, tkv, g), lambda b, qi, ki: (b, ki, 0)),
                pl.BlockSpec((1, tq, cp), lambda b, qi, ki: (b, qi, 0)),
                pl.BlockSpec((g, cp), lambda b, qi, ki: (0, 0)),
                pl.BlockSpec((1, cp), lambda b, qi, ki: (0, 0)),
            ],
            out_specs=pl.BlockSpec((1, tq, cp), lambda b, qi, ki: (b, qi, 0)),
            scratch_shapes=[
                pltpu.VMEM((tq, g), jnp.float32),        # per-head acc (lane-packed)
                pltpu.VMEM((n_head, tq, 1), jnp.float32),  # running max
                pltpu.VMEM((n_head, tq, 1), jnp.float32),  # running sum
            ]),
        compiler_params=pltpu.CompilerParams(
            dimension_semantics=("parallel", "parallel", "arbitrary"),
            vmem_limit_bytes=vmem_limit),
        cost_estimate=attn_cost,
    )(q_all, k_all, v_all, x_tok, wout, bout)

    # glue: [N, HW, Cp] -> NCHW, drop channel padding
    out = out_tok[:, :, :c].reshape(n, h, w, c)
    return jnp.transpose(out, (0, 3, 1, 2)).astype(x_nchw.dtype)


def _reference(x, params, n_head=1, eps=1e-5):
    """Pure-JAX f32 reference mirroring the PyTorch forward (NCHW)."""
    n, c, h, w = x.shape
    hw = h * w
    d = c // n_head
    mean = jnp.mean(x, axis=(1, 2, 3), keepdims=True)
    var = jnp.var(x, axis=(1, 2, 3), keepdims=True)
    xn = (x - mean) / jnp.sqrt(var + eps)
    xn = xn * params["gn_weight"].reshape(1, c, 1, 1) + params["gn_bias"].reshape(1, c, 1, 1)
    wqkv = params["qkv_weight"].reshape(3 * c, c)
    qkv = jnp.einsum("oc,nchw->nohw", wqkv, xn) + params["qkv_bias"].reshape(1, 3 * c, 1, 1)
    qkv = qkv.reshape(n, n_head * 3, d, hw).transpose(0, 1, 3, 2)   # [n, 3H, hw, d]
    q, k, v = jnp.split(qkv, 3, axis=1)
    scale = d ** (-0.25)
    att = jnp.einsum("nhqd,nhkd->nhqk", q * scale, k * scale)
    att = jax.nn.softmax(att, axis=-1)
    y = jnp.einsum("nhqk,nhkd->nhqd", att, v)                       # [n, H, hw, d]
    y = y.transpose(0, 1, 3, 2).reshape(n, c, h, w)
    wout = params["out_weight"].reshape(c, c)
    out = jnp.einsum("oc,nchw->nohw", wout, y) + params["out_bias"].reshape(1, c, 1, 1)
    return x + out


if __name__ == "__main__":
    # Small shapes consistent with the module: batch=2, channels=4, spatial=16.
    N, C, H, W = 2, 4, 16, 16
    N_HEAD = 2

    key = jax.random.PRNGKey(0)
    kx, k1, k2, k3, k4 = jax.random.split(key, 5)

    x = jax.random.normal(kx, (N, C, H, W), dtype=jnp.float32)

    bound_qkv = 1.0 / math.sqrt(C)
    params = {
        "gn_weight": jnp.ones((C,), jnp.float32),
        "gn_bias": jnp.zeros((C,), jnp.float32),
        "qkv_weight": jax.random.uniform(k1, (3 * C, C, 1, 1), jnp.float32,
                                         -bound_qkv, bound_qkv),
        "qkv_bias": jax.random.uniform(k2, (3 * C,), jnp.float32,
                                       -bound_qkv, bound_qkv),
        "out_weight": jax.random.uniform(k3, (C, C, 1, 1), jnp.float32,
                                         -bound_qkv, bound_qkv),
        "out_bias": jax.random.uniform(k4, (C,), jnp.float32,
                                       -bound_qkv, bound_qkv),
    }

    # block_q / block_kv = 128 so the test exercises multiple query tiles
    # (parallel grid axis) and multiple KV tiles (online-softmax path).
    out = self_attention_2d(x, params, n_head=N_HEAD, block_q=128, block_kv=128)
    out = jax.block_until_ready(out)

    ref = jax.block_until_ready(_reference(x, params, n_head=N_HEAD))
    assert out.shape == (N, C, H, W)
    # bf16 MXU operands (f32 accumulation) -> relaxed tolerance vs f32 reference.
    assert jnp.allclose(out, ref, atol=2e-2, rtol=2e-2), "mismatch vs reference"

    print("KERNEL_OK")
</pallas_src>

<mosaic_0001>
module attributes {stable_mosaic.version = 11 : i64} {
  func.func @_norm_qkv_kernel(%arg0: i32, %arg1: memref<1x256x128xf32, #tpu.memory_space<vmem>>, %arg2: memref<1x128xf32, #tpu.memory_space<vmem>>, %arg3: memref<1x128xf32, #tpu.memory_space<vmem>>, %arg4: memref<128x768xbf16, #tpu.memory_space<vmem>>, %arg5: memref<1x768xf32, #tpu.memory_space<vmem>>, %arg6: memref<1x256x256xbf16, #tpu.memory_space<vmem>>, %arg7: memref<1x256x256xbf16, #tpu.memory_space<vmem>>, %arg8: memref<1x256x256xbf16, #tpu.memory_space<vmem>>) attributes {dimension_semantics = [#tpu.dimension_semantics<parallel>], iteration_bounds = array<i64: 2>, scalar_prefetch = 0 : i64, scratch_operands = 0 : i64, tpu.core_type = #tpu.core_type<tc>, window_params = [{transform_indices = @transform_0, window_bounds = array<i64: 1, 256, 128>}, {pipeline_mode = #tpu.pipeline_mode<synchronous>, transform_indices = @transform_1, window_bounds = array<i64: 1, 128>}, {pipeline_mode = #tpu.pipeline_mode<synchronous>, transform_indices = @transform_2, window_bounds = array<i64: 1, 128>}, {pipeline_mode = #tpu.pipeline_mode<synchronous>, transform_indices = @transform_3, window_bounds = array<i64: 128, 768>}, {pipeline_mode = #tpu.pipeline_mode<synchronous>, transform_indices = @transform_4, window_bounds = array<i64: 1, 768>}, {transform_indices = @transform_5, window_bounds = array<i64: 1, 256, 256>}, {transform_indices = @transform_6, window_bounds = array<i64: 1, 256, 256>}, {transform_indices = @transform_7, window_bounds = array<i64: 1, 256, 256>}]} {
    %c0 = arith.constant 0 : index
    %c0_0 = arith.constant 0 : index
    %c0_1 = arith.constant 0 : index
    %0 = vector.load %arg1[%c0, %c0_0, %c0_1] : memref<1x256x128xf32, #tpu.memory_space<vmem>>, vector<1x256x128xf32>
    %1 = vector.shape_cast %0 : vector<1x256x128xf32> to vector<256x128xf32>
    %2 = vector.shape_cast %1 : vector<256x128xf32> to vector<1x256x128xf32>
    %cst = arith.constant dense<0.000000e+00> : vector<1xf32>
    %3 = vector.multi_reduction <add>, %2, %cst [1, 2] : vector<1x256x128xf32> to vector<1xf32>
    %4 = vector.shape_cast %3 : vector<1xf32> to vector<1x1x1xf32>
    %5 = vector.extract %4[0, 0, 0] : f32 from vector<1x1x1xf32>
    %6 = arith.mulf %1, %1 : vector<256x128xf32>
    %7 = vector.shape_cast %6 : vector<256x128xf32> to vector<1x256x128xf32>
    %cst_2 = arith.constant dense<0.000000e+00> : vector<1xf32>
    %8 = vector.multi_reduction <add>, %7, %cst_2 [1, 2] : vector<1x256x128xf32> to vector<1xf32>
    %9 = vector.shape_cast %8 : vector<1xf32> to vector<1x1x1xf32>
    %10 = vector.extract %9[0, 0, 0] : f32 from vector<1x1x1xf32>
    %cst_3 = arith.constant 9.765625E-4 : f32
    %11 = arith.mulf %5, %cst_3 : f32
    %cst_4 = arith.constant 9.765625E-4 : f32
    %12 = arith.mulf %10, %cst_4 : f32
    %13 = arith.mulf %11, %11 : f32
    %14 = arith.subf %12, %13 : f32
    %15 = vector.broadcast %11 : f32 to vector<256x128xf32>
    %16 = arith.subf %1, %15 : vector<256x128xf32>
    %cst_5 = arith.constant 9.99999974E-6 : f32
    %17 = arith.addf %14, %cst_5 : f32
    %18 = math.rsqrt %17 : f32
    %19 = vector.broadcast %18 : f32 to vector<256x128xf32>
    %20 = arith.mulf %16, %19 : vector<256x128xf32>
    %c0_6 = arith.constant 0 : index
    %c0_7 = arith.constant 0 : index
    %21 = vector.load %arg2[%c0_6, %c0_7] : memref<1x128xf32, #tpu.memory_space<vmem>>, vector<1x128xf32>
    %22 = vector.broadcast %21 : vector<1x128xf32> to vector<256x128xf32>
    %23 = arith.mulf %20, %22 : vector<256x128xf32>
    %c0_8 = arith.constant 0 : index
    %c0_9 = arith.constant 0 : index
    %24 = vector.load %arg3[%c0_8, %c0_9] : memref<1x128xf32, #tpu.memory_space<vmem>>, vector<1x128xf32>
    %25 = vector.broadcast %24 : vector<1x128xf32> to vector<256x128xf32>
    %26 = arith.addf %23, %25 : vector<256x128xf32>
    %27 = arith.truncf %26 : vector<256x128xf32> to vector<256x128xbf16>
    %c0_10 = arith.constant 0 : index
    %c0_11 = arith.constant 0 : index
    %28 = vector.load %arg4[%c0_10, %c0_11] : memref<128x768xbf16, #tpu.memory_space<vmem>>, vector<128x768xbf16>
    %cst_12 = arith.constant dense<0.000000e+00> : vector<256x768xf32>
    %29 = tpu.matmul %27, %28, %cst_12 {dimension_numbers = #tpu.dot_dimension_numbers<[1], [0], [0], [1], [0, 0, 1, 1], [], []>} : vector<256x128xbf16>, vector<128x768xbf16>, vector<256x768xf32> -> vector<256x768xf32>
    %c0_13 = arith.constant 0 : index
    %c0_14 = arith.constant 0 : index
    %30 = vector.load %arg5[%c0_13, %c0_14] : memref<1x768xf32, #tpu.memory_space<vmem>>, vector<1x768xf32>
    %31 = vector.broadcast %30 : vector<1x768xf32> to vector<256x768xf32>
    %32 = arith.addf %29, %31 : vector<256x768xf32>
    %33 = vector.extract_strided_slice %32 {offsets = [0, 0], sizes = [256, 256], strides = [1, 1]} : vector<256x768xf32> to vector<256x256xf32>
    %34 = arith.truncf %33 : vector<256x256xf32> to vector<256x256xbf16>
    %c0_15 = arith.constant 0 : index
    %c0_16 = arith.constant 0 : index
    %c0_17 = arith.constant 0 : index
    %35 = vector.load %arg6[%c0_15, %c0_16, %c0_17] : memref<1x256x256xbf16, #tpu.memory_space<vmem>>, vector<1x256x256xbf16>
    %36 = vector.shape_cast %35 : vector<1x256x256xbf16> to vector<256x256xbf16>
    %37 = vector.shape_cast %34 : vector<256x256xbf16> to vector<1x256x256xbf16>
    tpu.vector_store %arg6[%c0_15, %c0_16, %c0_17], %37 {strides = array<i32>} : memref<1x256x256xbf16, #tpu.memory_space<vmem>>, vector<1x256x256xbf16>,
    %38 = vector.extract_strided_slice %32 {offsets = [0, 256], sizes = [256, 256], strides = [1, 1]} : vector<256x768xf32> to vector<256x256xf32>
    %39 = arith.truncf %38 : vector<256x256xf32> to vector<256x256xbf16>
    %c0_18 = arith.constant 0 : index
    %c0_19 = arith.constant 0 : index
    %c0_20 = arith.constant 0 : index
    %40 = vector.load %arg7[%c0_18, %c0_19, %c0_20] : memref<1x256x256xbf16, #tpu.memory_space<vmem>>, vector<1x256x256xbf16>
    %41 = vector.shape_cast %40 : vector<1x256x256xbf16> to vector<256x256xbf16>
    %42 = vector.shape_cast %39 : vector<256x256xbf16> to vector<1x256x256xbf16>
    tpu.vector_store %arg7[%c0_18, %c0_19, %c0_20], %42 {strides = array<i32>} : memref<1x256x256xbf16, #tpu.memory_space<vmem>>, vector<1x256x256xbf16>,
    %43 = vector.extract_strided_slice %32 {offsets = [0, 512], sizes = [256, 256], strides = [1, 1]} : vector<256x768xf32> to vector<256x256xf32>
    %44 = arith.truncf %43 : vector<256x256xf32> to vector<256x256xbf16>
    %c0_21 = arith.constant 0 : index
    %c0_22 = arith.constant 0 : index
    %c0_23 = arith.constant 0 : index
    %45 = vector.load %arg8[%c0_21, %c0_22, %c0_23] : memref<1x256x256xbf16, #tpu.memory_space<vmem>>, vector<1x256x256xbf16>
    %46 = vector.shape_cast %45 : vector<1x256x256xbf16> to vector<256x256xbf16>
    %47 = vector.shape_cast %44 : vector<256x256xbf16> to vector<1x256x256xbf16>
    tpu.vector_store %arg8[%c0_21, %c0_22, %c0_23], %47 {strides = array<i32>} : memref<1x256x256xbf16, #tpu.memory_space<vmem>>, vector<1x256x256xbf16>,
    return
  }
  func.func @transform_0(%arg0: i32) -> (i32, i32, i32) {
    %c0_i32 = arith.constant 0 : i32
    %c0_i32_0 = arith.constant 0 : i32
    %c0_i32_1 = arith.constant 0 : i32
    return %arg0, %c0_i32, %c0_i32_0 : i32, i32, i32
  }
  func.func @transform_1(%arg0: i32) -> (i32, i32) {
    %c0_i32 = arith.constant 0 : i32
    %c0_i32_0 = arith.constant 0 : i32
    %c0_i32_1 = arith.constant 0 : i32
    return %c0_i32, %c0_i32_0 : i32, i32
  }
  func.func @transform_2(%arg0: i32) -> (i32, i32) {
    %c0_i32 = arith.constant 0 : i32
    %c0_i32_0 = arith.constant 0 : i32
    %c0_i32_1 = arith.constant 0 : i32
    return %c0_i32, %c0_i32_0 : i32, i32
  }
  func.func @transform_3(%arg0: i32) -> (i32, i32) {
    %c0_i32 = arith.constant 0 : i32
    %c0_i32_0 = arith.constant 0 : i32
    %c0_i32_1 = arith.constant 0 : i32
    return %c0_i32, %c0_i32_0 : i32, i32
  }
  func.func @transform_4(%arg0: i32) -> (i32, i32) {
    %c0_i32 = arith.constant 0 : i32
    %c0_i32_0 = arith.constant 0 : i32
    %c0_i32_1 = arith.constant 0 : i32
    return %c0_i32, %c0_i32_0 : i32, i32
  }
  func.func @transform_5(%arg0: i32) -> (i32, i32, i32) {
    %c0_i32 = arith.constant 0 : i32
    %c0_i32_0 = arith.constant 0 : i32
    %c0_i32_1 = arith.constant 0 : i32
    return %arg0, %c0_i32, %c0_i32_0 : i32, i32, i32
  }
  func.func @transform_6(%arg0: i32) -> (i32, i32, i32) {
    %c0_i32 = arith.constant 0 : i32
    %c0_i32_0 = arith.constant 0 : i32
    %c0_i32_1 = arith.constant 0 : i32
    return %arg0, %c0_i32, %c0_i32_0 : i32, i32, i32
  }
  func.func @transform_7(%arg0: i32) -> (i32, i32, i32) {
    %c0_i32 = arith.constant 0 : i32
    %c0_i32_0 = arith.constant 0 : i32
    %c0_i32_1 = arith.constant 0 : i32
    return %arg0, %c0_i32, %c0_i32_0 : i32, i32, i32
  }
}

</mosaic_0001>

<llo_original>
// kernel: tpu_custom_call.1
$region0: #{tpu_custom_call.1}
  #allocation0 [shape = 'u32[]', space=smem, size = 0x4, offset = 0x4, fixed_abs, tag = 'smem constant byte address 0x4 - core index']
  #allocation1 [shape = 'u32[144,128]{1,0:T(1,128)}', space=vmem, size = 0x12000, scoped, tag = 'internal scratch']
  %s0 = inlined_call_operand.hbm [shape: f32[2,256,128], index: 0, kind: input, shape index: {}]
  %s1 = inlined_call_operand.vmem [shape: f32[1,128], index: 1, kind: input, shape index: {}]
  %s2 = inlined_call_operand.vmem [shape: f32[1,128], index: 2, kind: input, shape index: {}]
  %s3 = inlined_call_operand.hbm [shape: bf16[128,768], index: 3, kind: input, shape index: {}]
  %s4 = inlined_call_operand.vmem [shape: f32[1,768], index: 4, kind: input, shape index: {}]
  %s5 = inlined_call_operand.hbm [shape: bf16[2,256,256], index: 5, kind: output, shape index: {0}]
  %s6 = inlined_call_operand.hbm [shape: bf16[2,256,256], index: 6, kind: output, shape index: {1}]
  %s7 = inlined_call_operand.hbm [shape: bf16[2,256,256], index: 7, kind: output, shape index: {2}]
  %8 = xla_tuple %s5, %s6, %s7
  %s9 = sld [smem:[#allocation0]]
  $region77: #{tpu_custom_call.1} parent=0
    _
  %s11 = ssub.s32 1, %s9
  %s12 = scalar_select 0, %s11, %s9
  $region1: #{tpu_custom_call.1} parent=0
    #allocation2 [shape = 'u8[262144]{0}', space=vmem, size = 0x40000, scoped, tag = 'input window, operand 0']
    #allocation3 [shape = 's32[2]{0}', space=sflag, size = 0x8, scoped, tag = 'scoped memory for tpu_custom_call.1']
    #allocation4 [shape = 's32[2]{0}', space=sflag, size = 0x8, scoped, tag = 'scoped memory for tpu_custom_call.1']
    #allocation5 [shape = 'u8[196608]{0}', space=vmem, size = 0x30000, scoped, tag = 'input window, operand 3, single buffered']
    #allocation6 [shape = 's32[1]{0}', space=sflag, size = 0x4, scoped, tag = 'scoped memory for tpu_custom_call.1']
    #allocation7 [shape = 'u8[262144]{0}', space=vmem, size = 0x40000, scoped, tag = 'output window, operand 0']
    #allocation8 [shape = 'u8[262144]{0}', space=vmem, size = 0x40000, scoped, tag = 'output window, operand 1']
    #allocation9 [shape = 's32[2]{0}', space=sflag, size = 0x8, scoped, tag = 'scoped memory for tpu_custom_call.1']
    #allocation10 [shape = 'u8[262144]{0}', space=vmem, size = 0x40000, scoped, tag = 'output window, operand 2']
    %13 = vsyncpa [#allocation3], 0
    %s14 = scalar_lea.sflag [#allocation3], 1
    %15 = vsyncpa %s14, 0
    %16 = vsyncpa [#allocation6], 0
    %17 = vsyncpa [#allocation4], 0
    %s18 = scalar_lea.sflag [#allocation4], 1
    %19 = vsyncpa %s18, 0
    %20 = vsyncpa [#allocation9], 0
    %s21 = scalar_lea.sflag [#allocation9], 1
    %22 = vsyncpa %s21, 0
    loop: start=0, step=1, limit=4
    $region2: #{tpu_custom_call.1} parent=1 // loop_pre_header
      _
    $region3: #{tpu_custom_call.1} parent=1 // loop_header
      %s24 = sphi 0, %s28
      %p25 = scmp.ge.s32.totalorder %s24, 4
      %s34 = sphi 0, %s36
      %s37 = sphi 0, %s34
      %s38 = sphi 0, %s37
      %s54 = sphi 0, %s38
      %s58 = sphi 0, %s58
      %s60 = sphi 0, %s58
      %s61 = sphi 0, %s60
      %s75 = sphi 0, %s61
      %s79 = sphi 0, %s79
      %s81 = sphi 0, %s79
      %s82 = sphi 0, %s81
      %s96 = sphi 0, %s82
      %s100 = sphi 0, %s100
      %s102 = sphi 0, %s100
      %s103 = sphi 0, %s102
      %s117 = sphi 0, %s103
      %s121 = sphi 0, %s121
      %s123 = sphi 0, %s121
      %s124 = sphi 0, %s123
      %s138 = sphi 0, %s124
      %s144 = sphi 0, %s146
      %s147 = sphi 0, %s144
      %s148 = sphi 0, %s147
      %s164 = sphi 0, %s148
      %s170 = sphi 0, %s172
      %s173 = sphi 0, %s170
      %s174 = sphi 0, %s173
      %s190 = sphi 0, %s174
      %s196 = sphi 0, %s198
      %s199 = sphi 0, %s196
      %s200 = sphi 0, %s199
      %s216 = sphi 0, %s200
    $region4: #{tpu_custom_call.1} parent=1 // loop_header_branch
      %27 = sbr.rel (%p25) target = $region8
    $region5: #{tpu_custom_call.1} parent=1 // loop_body
      %s29 = ssub.s32 %s24, 1
      %s30 = ssub.s32 %s24, 2
      %s31 = sadd.s32 %s24, 1
      %s32 = ssub.s32 %s24, %s31
      %p33 = scmp.eq.s32.totalorder %s32, 0
      %s35 = sadd.s32 %s34, 1
      %s36 = scalar_select %p33, %s34, %s35
      %p39 = pneg %p33
      %p40 = scmp.eq.s32.totalorder %s24, 1
      %p41 = por %p39, %p40
      %p42 = scmp.ne.s32.totalorder %s34, %s37
      %p43 = scmp.eq.s32.totalorder %s24, 0
      %p44 = por %p42, %p43
      %p45 = scmp.ne.s32.totalorder %s34, %s37
      %p46 = scmp.eq.s32.totalorder %s29, 1
      %p47 = por %p45, %p46
      %p48 = scmp.ne.s32.totalorder %s37, %s38
      %p49 = scmp.eq.s32.totalorder %s29, 0
      %p50 = por %p48, %p49
      %p51 = scmp.ne.s32.totalorder %s37, %s38
      %p52 = scmp.eq.s32.totalorder %s30, 1
      %p53 = por %p51, %p52
      %p55 = scmp.ne.s32.totalorder %s38, %s54
      %p56 = scmp.eq.s32.totalorder %s30, 0
      %p57 = por %p55, %p56
      %s59 = sadd.s32 %s58, 1
      %p62 = scmp.eq.s32.totalorder %s24, 1
      %p63 = scmp.ne.s32.totalorder %s58, %s60
      %p64 = scmp.eq.s32.totalorder %s24, 0
      %p65 = por %p63, %p64
      %p66 = scmp.ne.s32.totalorder %s58, %s60
      %p67 = scmp.eq.s32.totalorder %s29, 1
      %p68 = por %p66, %p67
      %p69 = scmp.ne.s32.totalorder %s60, %s61
      %p70 = scmp.eq.s32.totalorder %s29, 0
      %p71 = por %p69, %p70
      %p72 = scmp.ne.s32.totalorder %s60, %s61
      %p73 = scmp.eq.s32.totalorder %s30, 1
      %p74 = por %p72, %p73
      %p76 = scmp.ne.s32.totalorder %s61, %s75
      %p77 = scmp.eq.s32.totalorder %s30, 0
      %p78 = por %p76, %p77
      %s80 = sadd.s32 %s79, 1
      %p83 = scmp.eq.s32.totalorder %s24, 1
      %p84 = scmp.ne.s32.totalorder %s79, %s81
      %p85 = scmp.eq.s32.totalorder %s24, 0
      %p86 = por %p84, %p85
      %p87 = scmp.ne.s32.totalorder %s79, %s81
      %p88 = scmp.eq.s32.totalorder %s29, 1
      %p89 = por %p87, %p88
      %p90 = scmp.ne.s32.totalorder %s81, %s82
      %p91 = scmp.eq.s32.totalorder %s29, 0
      %p92 = por %p90, %p91
      %p93 = scmp.ne.s32.totalorder %s81, %s82
      %p94 = scmp.eq.s32.totalorder %s30, 1
      %p95 = por %p93, %p94
      %p97 = scmp.ne.s32.totalorder %s82, %s96
      %p98 = scmp.eq.s32.totalorder %s30, 0
      %p99 = por %p97, %p98
      %s101 = sadd.s32 %s100, 1
      %p104 = scmp.eq.s32.totalorder %s24, 1
      %p105 = scmp.ne.s32.totalorder %s100, %s102
      %p106 = scmp.eq.s32.totalorder %s24, 0
      %p107 = por %p105, %p106
      %p108 = scmp.ne.s32.totalorder %s100, %s102
      %p109 = scmp.eq.s32.totalorder %s29, 1
      %p110 = por %p108, %p109
      %p111 = scmp.ne.s32.totalorder %s102, %s103
      %p112 = scmp.eq.s32.totalorder %s29, 0
      %p113 = por %p111, %p112
      %p114 = scmp.ne.s32.totalorder %s102, %s103
      %p115 = scmp.eq.s32.totalorder %s30, 1
      %p116 = por %p114, %p115
      %p118 = scmp.ne.s32.totalorder %s103, %s117
      %p119 = scmp.eq.s32.totalorder %s30, 0
      %p120 = por %p118, %p119
      %s122 = sadd.s32 %s121, 1
      %p125 = scmp.eq.s32.totalorder %s24, 1
      %p126 = scmp.ne.s32.totalorder %s121, %s123
      %p127 = scmp.eq.s32.totalorder %s24, 0
      %p128 = por %p126, %p127
      %p129 = scmp.ne.s32.totalorder %s121, %s123
      %p130 = scmp.eq.s32.totalorder %s29, 1
      %p131 = por %p129, %p130
      %p132 = scmp.ne.s32.totalorder %s123, %s124
      %p133 = scmp.eq.s32.totalorder %s29, 0
      %p134 = por %p132, %p133
      %p135 = scmp.ne.s32.totalorder %s123, %s124
      %p136 = scmp.eq.s32.totalorder %s30, 1
      %p137 = por %p135, %p136
      %p139 = scmp.ne.s32.totalorder %s124, %s138
      %p140 = scmp.eq.s32.totalorder %s30, 0
      %p141 = por %p139, %p140
      %s142 = ssub.s32 %s24, %s31
      %p143 = scmp.eq.s32.totalorder %s142, 0
      %s145 = sadd.s32 %s144, 1
      %s146 = scalar_select %p143, %s144, %s145
      %p149 = pneg %p143
      %p150 = scmp.eq.s32.totalorder %s24, 1
      %p151 = por %p149, %p150
      %p152 = scmp.ne.s32.totalorder %s144, %s147
      %p153 = scmp.eq.s32.totalorder %s24, 0
      %p154 = por %p152, %p153
      %p155 = scmp.ne.s32.totalorder %s144, %s147
      %p156 = scmp.eq.s32.totalorder %s29, 1
      %p157 = por %p155, %p156
      %p158 = scmp.ne.s32.totalorder %s147, %s148
      %p159 = scmp.eq.s32.totalorder %s29, 0
      %p160 = por %p158, %p159
      %p161 = scmp.ne.s32.totalorder %s147, %s148
      %p162 = scmp.eq.s32.totalorder %s30, 1
      %p163 = por %p161, %p162
      %p165 = scmp.ne.s32.totalorder %s148, %s164
      %p166 = scmp.eq.s32.totalorder %s30, 0
      %p167 = por %p165, %p166
      %s168 = ssub.s32 %s24, %s31
      %p169 = scmp.eq.s32.totalorder %s168, 0
      %s171 = sadd.s32 %s170, 1
      %s172 = scalar_select %p169, %s170, %s171
      %p175 = pneg %p169
      %p176 = scmp.eq.s32.totalorder %s24, 1
      %p177 = por %p175, %p176
      %p178 = scmp.ne.s32.totalorder %s170, %s173
      %p179 = scmp.eq.s32.totalorder %s24, 0
      %p180 = por %p178, %p179
      %p181 = scmp.ne.s32.totalorder %s170, %s173
      %p182 = scmp.eq.s32.totalorder %s29, 1
      %p183 = por %p181, %p182
      %p184 = scmp.ne.s32.totalorder %s173, %s174
      %p185 = scmp.eq.s32.totalorder %s29, 0
      %p186 = por %p184, %p185
      %p187 = scmp.ne.s32.totalorder %s173, %s174
      %p188 = scmp.eq.s32.totalorder %s30, 1
      %p189 = por %p187, %p188
      %p191 = scmp.ne.s32.totalorder %s174, %s190
      %p192 = scmp.eq.s32.totalorder %s30, 0
      %p193 = por %p191, %p192
      %s194 = ssub.s32 %s24, %s31
      %p195 = scmp.eq.s32.totalorder %s194, 0
      %s197 = sadd.s32 %s196, 1
      %s198 = scalar_select %p195, %s196, %s197
      %p201 = pneg %p195
      %p202 = scmp.eq.s32.totalorder %s24, 1
      %p203 = por %p201, %p202
      %p204 = scmp.ne.s32.totalorder %s196, %s199
      %p205 = scmp.eq.s32.totalorder %s24, 0
      %p206 = por %p204, %p205
      %p207 = scmp.ne.s32.totalorder %s196, %s199
      %p208 = scmp.eq.s32.totalorder %s29, 1
      %p209 = por %p207, %p208
      %p210 = scmp.ne.s32.totalorder %s199, %s200
      %p211 = scmp.eq.s32.totalorder %s29, 0
      %p212 = por %p210, %p211
      %p213 = scmp.ne.s32.totalorder %s199, %s200
      %p214 = scmp.eq.s32.totalorder %s30, 1
      %p215 = por %p213, %p214
      %p217 = scmp.ne.s32.totalorder %s200, %s216
      %p218 = scmp.eq.s32.totalorder %s30, 0
      %p219 = por %p217, %p218
      %p220 = scmp.le.s32.totalorder 1, %s24
      %p221 = scmp.lt.s32.totalorder %s24, 3
      %p222 = pnand %p220, %p221
      %p223 = pneg %p222
      // Predicated region
      $region9: #{tpu_custom_call.1} parent=5 // pred_check
        _
      $region10: #{tpu_custom_call.1} parent=5 // pred_check_branch
        %225 = sbr.rel (%p222) target = $region12
      $region11: #{tpu_custom_call.1} parent=5 // pred_region
        %s226 = ssub.s32 %s24, 1
        // Predicated region
        $region13: #{tpu_custom_call.1} parent=11 // pred_check
          %p227 = pneg %p71
        $region14: #{tpu_custom_call.1} parent=11 // pred_check_branch
          %229 = sbr.rel (%p227) target = $region16
        $region15: #{tpu_custom_call.1} parent=11 // pred_region
          _
        $region16: #{tpu_custom_call.1} parent=11 // pred_fallthru
          _
        // Predicated region
        $region17: #{tpu_custom_call.1} parent=11 // pred_check
          %p230 = pneg %p92
        $region18: #{tpu_custom_call.1} parent=11 // pred_check_branch
          %232 = sbr.rel (%p230) target = $region20
        $region19: #{tpu_custom_call.1} parent=11 // pred_region
          _
        $region20: #{tpu_custom_call.1} parent=11 // pred_fallthru
          _
        // Predicated region
        $region21: #{tpu_custom_call.1} parent=11 // pred_check
          %p233 = pneg %p113
        $region22: #{tpu_custom_call.1} parent=11 // pred_check_branch
          %235 = sbr.rel (%p233) target = $region24
        $region23: #{tpu_custom_call.1} parent=11 // pred_region
          %s237 = ssub.s32 6144, 6144
          %238 = vsyncadd [#allocation6], %s237
          %s239 = sshll.u32 [#allocation5], 4
          %s240 = int_to_ptr.vmem [resolvable:$true] %s239
          %245 = dma.hbm_to_vmem [thread:$0]  %s3, 6144, %s240, [#allocation6], 384, 384, 24
        $region24: #{tpu_custom_call.1} parent=11 // pred_fallthru
          _
        // Predicated region
        $region25: #{tpu_custom_call.1} parent=11 // pred_check
          %p246 = pneg %p134
        $region26: #{tpu_custom_call.1} parent=11 // pred_check_branch
          %248 = sbr.rel (%p246) target = $region28
        $region27: #{tpu_custom_call.1} parent=11 // pred_region
          _
        $region28: #{tpu_custom_call.1} parent=11 // pred_fallthru
          _
      $region12: #{tpu_custom_call.1} parent=5 // pred_fallthru
        _
      %p249 = scmp.lt.s32.totalorder %s24, 2
      // Predicated region
      $region29: #{tpu_custom_call.1} parent=5 // pred_check
        %p250 = pneg %p249
      $region30: #{tpu_custom_call.1} parent=5 // pred_check_branch
        %252 = sbr.rel (%p250) target = $region32
      $region31: #{tpu_custom_call.1} parent=5 // pred_region
        // Predicated region
        $region33: #{tpu_custom_call.1} parent=31 // pred_check
          %p253 = pneg %p44
        $region34: #{tpu_custom_call.1} parent=31 // pred_check_branch
          %255 = sbr.rel (%p253) target = $region36
        $region35: #{tpu_custom_call.1} parent=31 // pred_region
          %s256 = sand.u32 %s34, 1
          %s257 = scalar_lea.sflag [#allocation3], %s256
          %s258 = sand.u32 %s34, 1
          %s259 = smul.addr %s258, 256
          %s260 = scalar_lea.vmem [#allocation2], %s259
          %s262 = ssub.s32 4096, 4096
          %263 = vsyncadd %s257, %s262
          %s264 = smul.addr %s24, 32
          %s265 = smul.addr %s264, 128
          %s266 = scalar_lea.hbm %s0, %s265
          %s267 = sshll.u32 %s260, 4
          %s268 = int_to_ptr.vmem [resolvable:$true] %s267
          %273 = dma.hbm_to_vmem [thread:$0]  %s266, 4096, %s268, %s257, 128, 128, 8
        $region36: #{tpu_custom_call.1} parent=31 // pred_fallthru
          _
      $region32: #{tpu_custom_call.1} parent=5 // pred_fallthru
        _
      %p274 = scmp.le.s32.totalorder 1, %s24
      %p275 = scmp.lt.s32.totalorder %s24, 3
      %p276 = pnand %p274, %p275
      %p277 = pneg %p276
      // Predicated region
      $region37: #{tpu_custom_call.1} parent=5 // pred_check
        _
      $region38: #{tpu_custom_call.1} parent=5 // pred_check_branch
        %279 = sbr.rel (%p276) target = $region40
      $region39: #{tpu_custom_call.1} parent=5 // pred_region
        %s280 = ssub.s32 %s24, 1
        %s281 = sand.u32 %s37, 1
        %s282 = scalar_lea.sflag [#allocation3], %s281
        %s283 = sand.u32 %s37, 1
        %s284 = smul.addr %s283, 256
        %s285 = scalar_lea.vmem [#allocation2], %s284
        // Predicated region
        $region41: #{tpu_custom_call.1} parent=39 // pred_check
          %p286 = pneg %p50
        $region42: #{tpu_custom_call.1} parent=39 // pred_check_branch
          %288 = sbr.rel (%p286) target = $region44
        $region43: #{tpu_custom_call.1} parent=39 // pred_region
          %289 = dma.done %s282, 4096
        $region44: #{tpu_custom_call.1} parent=39 // pred_fallthru
          _
        // Predicated region
        $region45: #{tpu_custom_call.1} parent=39 // pred_check
          %p290 = pneg %p113
        $region46: #{tpu_custom_call.1} parent=39 // pred_check_branch
          %292 = sbr.rel (%p290) target = $region48
        $region47: #{tpu_custom_call.1} parent=39 // pred_region
          %293 = dma.done [#allocation6], 6144
        $region48: #{tpu_custom_call.1} parent=39 // pred_fallthru
          _
        %s294 = sand.u32 %s37, 1
        %s295 = scalar_lea.sflag [#allocation3], %s294
        %s296 = sand.u32 %s37, 1
        %s297 = smul.addr %s296, 256
        %s298 = scalar_lea.vmem [#allocation2], %s297
        %p299 = pneg %p50
        %p300 = pneg %p47
        %p301 = pneg %p71
        %p302 = pneg %p68
        %p303 = pneg %p92
        %p304 = pneg %p89
        %p305 = pneg %p113
        %p306 = pneg %p110
        %p307 = pneg %p134
        %p308 = pneg %p131
        %p309 = pneg %p160
        %p310 = pneg %p157
        %s311 = sand.u32 %s147, 1
        %s312 = scalar_lea.sflag [#allocation4], %s311
        %s313 = sand.u32 %s147, 1
        %s314 = smul.addr %s313, 256
        %s315 = scalar_lea.vmem [#allocation7], %s314
        %p316 = pneg %p186
        %p317 = pneg %p183
        %s318 = sand.u32 %s29, 1
        %s319 = scalar_lea.sflag [#allocation9], %s318
        %s320 = sand.u32 %s173, 1
        %s321 = smul.addr %s320, 256
        %s322 = scalar_lea.vmem [#allocation8], %s321
        %p323 = pneg %p212
        %p324 = pneg %p209
        %s325 = sand.u32 %s29, 1
        %s326 = scalar_lea.sflag [#allocation9], %s325
        %s327 = sand.u32 %s199, 1
        %s328 = smul.addr %s327, 256
        %s329 = scalar_lea.vmem [#allocation10], %s328
        %v331 = vld [vmem:[%s285] sm:$0xff]
        %v332 = vld [vmem:[%s285 + $0x8] sm:$0xff]
        %v333 = vld [vmem:[%s285 + $0x10] sm:$0xff]
        %v334 = vld [vmem:[%s285 + $0x18] sm:$0xff]
        %v335 = vld [vmem:[%s285 + $0x20] sm:$0xff]
        %v336 = vld [vmem:[%s285 + $0x28] sm:$0xff]
        %v337 = vld [vmem:[%s285 + $0x30] sm:$0xff]
        %v338 = vld [vmem:[%s285 + $0x38] sm:$0xff]
        %v339 = vld [vmem:[%s285 + $0x40] sm:$0xff]
        %v340 = vld [vmem:[%s285 + $0x48] sm:$0xff]
        %v341 = vld [vmem:[%s285 + $0x50] sm:$0xff]
        %v342 = vld [vmem:[%s285 + $0x58] sm:$0xff]
        %v343 = vld [vmem:[%s285 + $0x60] sm:$0xff]
        %v344 = vld [vmem:[%s285 + $0x68] sm:$0xff]
        %v345 = vld [vmem:[%s285 + $0x70] sm:$0xff]
        %v346 = vld [vmem:[%s285 + $0x78] sm:$0xff]
        %v347 = vld [vmem:[%s285 + $0x80] sm:$0xff]
        %v348 = vld [vmem:[%s285 + $0x88] sm:$0xff]
        %v349 = vld [vmem:[%s285 + $0x90] sm:$0xff]
        %v350 = vld [vmem:[%s285 + $0x98] sm:$0xff]
        %v351 = vld [vmem:[%s285 + $0xa0] sm:$0xff]
        %v352 = vld [vmem:[%s285 + $0xa8] sm:$0xff]
        %v353 = vld [vmem:[%s285 + $0xb0] sm:$0xff]
        %v354 = vld [vmem:[%s285 + $0xb8] sm:$0xff]
        %v355 = vld [vmem:[%s285 + $0xc0] sm:$0xff]
        %v356 = vld [vmem:[%s285 + $0xc8] sm:$0xff]
        %v357 = vld [vmem:[%s285 + $0xd0] sm:$0xff]
        %v358 = vld [vmem:[%s285 + $0xd8] sm:$0xff]
        %v359 = vld [vmem:[%s285 + $0xe0] sm:$0xff]
        %v360 = vld [vmem:[%s285 + $0xe8] sm:$0xff]
        %v361 = vld [vmem:[%s285 + $0xf0] sm:$0xff]
        %v362 = vld [vmem:[%s285 + $0xf8] sm:$0xff]
        %v363 = vadd.f32 %v331, %v332
        %v364 = vadd.f32 %v363, %v333
        %v365 = vadd.f32 %v364, %v334
        %v366 = vadd.f32 %v365, %v335
        %v367 = vadd.f32 %v366, %v336
        %v368 = vadd.f32 %v367, %v337
        %v369 = vadd.f32 %v368, %v338
        %v370 = vadd.f32 %v369, %v339
        %v371 = vadd.f32 %v370, %v340
        %v372 = vadd.f32 %v371, %v341
        %v373 = vadd.f32 %v372, %v342
        %v374 = vadd.f32 %v373, %v343
        %v375 = vadd.f32 %v374, %v344
        %v376 = vadd.f32 %v375, %v345
        %v377 = vadd.f32 %v376, %v346
        %v378 = vadd.f32 %v377, %v347
        %v379 = vadd.f32 %v378, %v348
        %v380 = vadd.f32 %v379, %v349
        %v381 = vadd.f32 %v380, %v350
        %v382 = vadd.f32 %v381, %v351
        %v383 = vadd.f32 %v382, %v352
        %v384 = vadd.f32 %v383, %v353
        %v385 = vadd.f32 %v384, %v354
        %v386 = vadd.f32 %v385, %v355
        %v387 = vadd.f32 %v386, %v356
        %v388 = vadd.f32 %v387, %v357
        %v389 = vadd.f32 %v388, %v358
        %v390 = vadd.f32 %v389, %v359
        %v391 = vadd.f32 %v390, %v360
        %v392 = vadd.f32 %v391, %v361
        %v393 = vadd.f32 %v392, %v362
        %394 = vadd.xlane.f32.xlu0 %v393
        %v395 = vpop.xlane.xlu0 %394
        %v396 = vrot.slane %v395, 4
        %v397 = vadd.f32 %v395, %v396
        %v398 = vrot.slane %v397, 2
        %v399 = vadd.f32 %v397, %v398
        %v400 = vrot.slane %v399, 1
        %v401 = vadd.f32 %v399, %v400
        %s402 = vtos %v401
        %v403 = vmul.f32 %v331, %v331
        %v404 = vmul.f32 %v332, %v332
        %v405 = vmul.f32 %v333, %v333
        %v406 = vmul.f32 %v334, %v334
        %v407 = vmul.f32 %v335, %v335
        %v408 = vmul.f32 %v336, %v336
        %v409 = vmul.f32 %v337, %v337
        %v410 = vmul.f32 %v338, %v338
        %v411 = vmul.f32 %v339, %v339
        %v412 = vmul.f32 %v340, %v340
        %v413 = vmul.f32 %v341, %v341
        %v414 = vmul.f32 %v342, %v342
        %v415 = vmul.f32 %v343, %v343
        %v416 = vmul.f32 %v344, %v344
        %v417 = vmul.f32 %v345, %v345
        %v418 = vmul.f32 %v346, %v346
        %v419 = vmul.f32 %v347, %v347
        %v420 = vmul.f32 %v348, %v348
        %v421 = vmul.f32 %v349, %v349
        %v422 = vmul.f32 %v350, %v350
        %v423 = vmul.f32 %v351, %v351
        %v424 = vmul.f32 %v352, %v352
        %v425 = vmul.f32 %v353, %v353
        %v426 = vmul.f32 %v354, %v354
        %v427 = vmul.f32 %v355, %v355
        %v428 = vmul.f32 %v356, %v356
        %v429 = vmul.f32 %v357, %v357
        %v430 = vmul.f32 %v358, %v358
        %v431 = vmul.f32 %v359, %v359
        %v432 = vmul.f32 %v360, %v360
        %v433 = vmul.f32 %v361, %v361
        %v434 = vmul.f32 %v362, %v362
        %v435 = vadd.f32 %v403, %v404
        %v436 = vadd.f32 %v435, %v405
        %v437 = vadd.f32 %v436, %v406
        %v438 = vadd.f32 %v437, %v407
        %v439 = vadd.f32 %v438, %v408
        %v440 = vadd.f32 %v439, %v409
        %v441 = vadd.f32 %v440, %v410
        %v442 = vadd.f32 %v441, %v411
        %v443 = vadd.f32 %v442, %v412
        %v444 = vadd.f32 %v443, %v413
        %v445 = vadd.f32 %v444, %v414
        %v446 = vadd.f32 %v445, %v415
        %v447 = vadd.f32 %v446, %v416
        %v448 = vadd.f32 %v447, %v417
        %v449 = vadd.f32 %v448, %v418
        %v450 = vadd.f32 %v449, %v419
        %v451 = vadd.f32 %v450, %v420
        %v452 = vadd.f32 %v451, %v421
        %v453 = vadd.f32 %v452, %v422
        %v454 = vadd.f32 %v453, %v423
        %v455 = vadd.f32 %v454, %v424
        %v456 = vadd.f32 %v455, %v425
        %v457 = vadd.f32 %v456, %v426
        %v458 = vadd.f32 %v457, %v427
        %v459 = vadd.f32 %v458, %v428
        %v460 = vadd.f32 %v459, %v429
        %v461 = vadd.f32 %v460, %v430
        %v462 = vadd.f32 %v461, %v431
        %v463 = vadd.f32 %v462, %v432
        %v464 = vadd.f32 %v463, %v433
        %v465 = vadd.f32 %v464, %v434
        %466 = vadd.xlane.f32.xlu0 %v465
        %v467 = vpop.xlane.xlu0 %466
        %v468 = vrot.slane %v467, 4
        %v469 = vadd.f32 %v467, %v468
        %v470 = vrot.slane %v469, 2
        %v471 = vadd.f32 %v469, %v470
        %v472 = vrot.slane %v471, 1
        %v473 = vadd.f32 %v471, %v472
        %s474 = vtos %v473
        %s475 = smul.f32 %s402, 0.0009765625
        %s476 = smul.f32 %s474, 0.0009765625
        %s477 = smul.f32 %s475, %s475
        %s478 = ssub.f32 %s476, %s477
        %v479 = vstv %s475
        %v480 = vsub.f32 %v331, %v479
        %v481 = vsub.f32 %v332, %v479
        %v482 = vsub.f32 %v333, %v479
        %v483 = vsub.f32 %v334, %v479
        %v484 = vsub.f32 %v335, %v479
        %v485 = vsub.f32 %v336, %v479
        %v486 = vsub.f32 %v337, %v479
        %v487 = vsub.f32 %v338, %v479
        %v488 = vsub.f32 %v339, %v479
        %v489 = vsub.f32 %v340, %v479
        %v490 = vsub.f32 %v341, %v479
        %v491 = vsub.f32 %v342, %v479
        %v492 = vsub.f32 %v343, %v479
        %v493 = vsub.f32 %v344, %v479
        %v494 = vsub.f32 %v345, %v479
        %v495 = vsub.f32 %v346, %v479
        %v496 = vsub.f32 %v347, %v479
        %v497 = vsub.f32 %v348, %v479
        %v498 = vsub.f32 %v349, %v479
        %v499 = vsub.f32 %v350, %v479
        %v500 = vsub.f32 %v351, %v479
        %v501 = vsub.f32 %v352, %v479
        %v502 = vsub.f32 %v353, %v479
        %v503 = vsub.f32 %v354, %v479
        %v504 = vsub.f32 %v355, %v479
        %v505 = vsub.f32 %v356, %v479
        %v506 = vsub.f32 %v357, %v479
        %v507 = vsub.f32 %v358, %v479
        %v508 = vsub.f32 %v359, %v479
        %v509 = vsub.f32 %v360, %v479
        %v510 = vsub.f32 %v361, %v479
        %v511 = vsub.f32 %v362, %v479
        %s512 = sadd.f32 %s478, 1e-05
        %v513 = vstv %s512
        %v514 = vrsqrt.pop %v513
        %s515 = vtos %v514
        %v516 = vstv %s515
        %v517 = vmul.f32 %v480, %v516
        %v518 = vmul.f32 %v481, %v516
        %v519 = vmul.f32 %v482, %v516
        %v520 = vmul.f32 %v483, %v516
        %v521 = vmul.f32 %v484, %v516
        %v522 = vmul.f32 %v485, %v516
        %v523 = vmul.f32 %v486, %v516
        %v524 = vmul.f32 %v487, %v516
        %v525 = vmul.f32 %v488, %v516
        %v526 = vmul.f32 %v489, %v516
        %v527 = vmul.f32 %v490, %v516
        %v528 = vmul.f32 %v491, %v516
        %v529 = vmul.f32 %v492, %v516
        %v530 = vmul.f32 %v493, %v516
        %v531 = vmul.f32 %v494, %v516
        %v532 = vmul.f32 %v495, %v516
        %v533 = vmul.f32 %v496, %v516
        %v534 = vmul.f32 %v497, %v516
        %v535 = vmul.f32 %v498, %v516
        %v536 = vmul.f32 %v499, %v516
        %v537 = vmul.f32 %v500, %v516
        %v538 = vmul.f32 %v501, %v516
        %v539 = vmul.f32 %v502, %v516
        %v540 = vmul.f32 %v503, %v516
        %v541 = vmul.f32 %v504, %v516
        %v542 = vmul.f32 %v505, %v516
        %v543 = vmul.f32 %v506, %v516
        %v544 = vmul.f32 %v507, %v516
        %v545 = vmul.f32 %v508, %v516
        %v546 = vmul.f32 %v509, %v516
        %v547 = vmul.f32 %v510, %v516
        %v548 = vmul.f32 %v511, %v516
        %v549 = vld [vmem:[%s1] sm:$0x1]
        %v551 = vlaneseq
        %v552 = vshrl.u32 %v551, 7
        %v553 = vsub.s32 0, %v552
        %v554 = vrot.slane %v549, %v553
        %v556 = vmul.f32 %v517, %v554
        %v557 = vmul.f32 %v518, %v554
        %v558 = vmul.f32 %v519, %v554
        %v559 = vmul.f32 %v520, %v554
        %v560 = vmul.f32 %v521, %v554
        %v561 = vmul.f32 %v522, %v554
        %v562 = vmul.f32 %v523, %v554
        %v563 = vmul.f32 %v524, %v554
        %v564 = vmul.f32 %v525, %v554
        %v565 = vmul.f32 %v526, %v554
        %v566 = vmul.f32 %v527, %v554
        %v567 = vmul.f32 %v528, %v554
        %v568 = vmul.f32 %v529, %v554
        %v569 = vmul.f32 %v530, %v554
        %v570 = vmul.f32 %v531, %v554
        %v571 = vmul.f32 %v532, %v554
        %v572 = vmul.f32 %v533, %v554
        %v573 = vmul.f32 %v534, %v554
        %v574 = vmul.f32 %v535, %v554
        %v575 = vmul.f32 %v536, %v554
        %v576 = vmul.f32 %v537, %v554
        %v577 = vmul.f32 %v538, %v554
        %v578 = vmul.f32 %v539, %v554
        %v579 = vmul.f32 %v540, %v554
        %v580 = vmul.f32 %v541, %v554
        %v581 = vmul.f32 %v542, %v554
        %v582 = vmul.f32 %v543, %v554
        %v583 = vmul.f32 %v544, %v554
        %v584 = vmul.f32 %v545, %v554
        %v585 = vmul.f32 %v546, %v554
        %v586 = vmul.f32 %v547, %v554
        %v587 = vmul.f32 %v548, %v554
        %v588 = vld [vmem:[%s2] sm:$0x1]
        %v590 = vlaneseq
        %v591 = vshrl.u32 %v590, 7
        %v592 = vsub.s32 0, %v591
        %v593 = vrot.slane %v588, %v592
        %v595 = vadd.f32 %v556, %v593
        %v596 = vadd.f32 %v557, %v593
        %v597 = vadd.f32 %v558, %v593
        %v598 = vadd.f32 %v559, %v593
        %v599 = vadd.f32 %v560, %v593
        %v600 = vadd.f32 %v561, %v593
        %v601 = vadd.f32 %v562, %v593
        %v602 = vadd.f32 %v563, %v593
        %v603 = vadd.f32 %v564, %v593
        %v604 = vadd.f32 %v565, %v593
        %v605 = vadd.f32 %v566, %v593
        %v606 = vadd.f32 %v567, %v593
        %v607 = vadd.f32 %v568, %v593
        %v608 = vadd.f32 %v569, %v593
        %v609 = vadd.f32 %v570, %v593
        %v610 = vadd.f32 %v571, %v593
        %v611 = vadd.f32 %v572, %v593
        %v612 = vadd.f32 %v573, %v593
        %v613 = vadd.f32 %v574, %v593
        %v614 = vadd.f32 %v575, %v593
        %v615 = vadd.f32 %v576, %v593
        %v616 = vadd.f32 %v577, %v593
        %v617 = vadd.f32 %v578, %v593
        %v618 = vadd.f32 %v579, %v593
        %v619 = vadd.f32 %v580, %v593
        %v620 = vadd.f32 %v581, %v593
        %v621 = vadd.f32 %v582, %v593
        %v622 = vadd.f32 %v583, %v593
        %v623 = vadd.f32 %v584, %v593
        %v624 = vadd.f32 %v585, %v593
        %v625 = vadd.f32 %v586, %v593
        %v626 = vadd.f32 %v587, %v593
        %v627 = vpack.c.bf16 %v596, %v595
        %v628 = vpack.c.bf16 %v598, %v597
        %v629 = vpack.c.bf16 %v600, %v599
        %v630 = vpack.c.bf16 %v602, %v601
        %v631 = vpack.c.bf16 %v604, %v603
        %v632 = vpack.c.bf16 %v606, %v605
        %v633 = vpack.c.bf16 %v608, %v607
        %v634 = vpack.c.bf16 %v610, %v609
        %v635 = vpack.c.bf16 %v612, %v611
        %v636 = vpack.c.bf16 %v614, %v613
        %v637 = vpack.c.bf16 %v616, %v615
        %v638 = vpack.c.bf16 %v618, %v617
        %v639 = vpack.c.bf16 %v620, %v619
        %v640 = vpack.c.bf16 %v622, %v621
        %v641 = vpack.c.bf16 %v624, %v623
        %v642 = vpack.c.bf16 %v626, %v625
        %v643 = vld [vmem:[#allocation5] sm:$0xff]
        %v644 = vld [vmem:[#allocation5 + $0x8] sm:$0xff]
        %v645 = vld [vmem:[#allocation5 + $0x10] sm:$0xff]
        %v646 = vld [vmem:[#allocation5 + $0x18] sm:$0xff]
        %v647 = vld [vmem:[#allocation5 + $0x20] sm:$0xff]
        %v648 = vld [vmem:[#allocation5 + $0x28] sm:$0xff]
        %v649 = vld [vmem:[#allocation5 + $0x30] sm:$0xff]
        %v650 = vld [vmem:[#allocation5 + $0x38] sm:$0xff]
        %v651 = vld [vmem:[#allocation5 + $0x40] sm:$0xff]
        %v652 = vld [vmem:[#allocation5 + $0x48] sm:$0xff]
        %v653 = vld [vmem:[#allocation5 + $0x50] sm:$0xff]
        %v654 = vld [vmem:[#allocation5 + $0x58] sm:$0xff]
        %v655 = vld [vmem:[#allocation5 + $0x60] sm:$0xff]
        %v656 = vld [vmem:[#allocation5 + $0x68] sm:$0xff]
        %v657 = vld [vmem:[#allocation5 + $0x70] sm:$0xff]
        %v658 = vld [vmem:[#allocation5 + $0x78] sm:$0xff]
        %v659 = vld [vmem:[#allocation5 + $0x80] sm:$0xff]
        %v660 = vld [vmem:[#allocation5 + $0x88] sm:$0xff]
        %v661 = vld [vmem:[#allocation5 + $0x90] sm:$0xff]
        %v662 = vld [vmem:[#allocation5 + $0x98] sm:$0xff]
        %v663 = vld [vmem:[#allocation5 + $0xa0] sm:$0xff]
        %v664 = vld [vmem:[#allocation5 + $0xa8] sm:$0xff]
        %v665 = vld [vmem:[#allocation5 + $0xb0] sm:$0xff]
        %v666 = vld [vmem:[#allocation5 + $0xb8] sm:$0xff]
        %v667 = vld [vmem:[#allocation5 + $0xc0] sm:$0xff]
        %v668 = vld [vmem:[#allocation5 + $0xc8] sm:$0xff]
        %v669 = vld [vmem:[#allocation5 + $0xd0] sm:$0xff]
        %v670 = vld [vmem:[#allocation5 + $0xd8] sm:$0xff]
        %v671 = vld [vmem:[#allocation5 + $0xe0] sm:$0xff]
        %v672 = vld [vmem:[#allocation5 + $0xe8] sm:$0xff]
        %v673 = vld [vmem:[#allocation5 + $0xf0] sm:$0xff]
        %v674 = vld [vmem:[#allocation5 + $0xf8] sm:$0xff]
        %v675 = vld [vmem:[#allocation5 + $0x100] sm:$0xff]
        %v676 = vld [vmem:[#allocation5 + $0x108] sm:$0xff]
        %v677 = vld [vmem:[#allocation5 + $0x110] sm:$0xff]
        %v678 = vld [vmem:[#allocation5 + $0x118] sm:$0xff]
        %v679 = vld [vmem:[#allocation5 + $0x120] sm:$0xff]
        %v680 = vld [vmem:[#allocation5 + $0x128] sm:$0xff]
        %v681 = vld [vmem:[#allocation5 + $0x130] sm:$0xff]
        %v682 = vld [vmem:[#allocation5 + $0x138] sm:$0xff]
        %v683 = vld [vmem:[#allocation5 + $0x140] sm:$0xff]
        %v684 = vld [vmem:[#allocation5 + $0x148] sm:$0xff]
        %v685 = vld [vmem:[#allocation5 + $0x150] sm:$0xff]
        %v686 = vld [vmem:[#allocation5 + $0x158] sm:$0xff]
        %v687 = vld [vmem:[#allocation5 + $0x160] sm:$0xff]
        %v688 = vld [vmem:[#allocation5 + $0x168] sm:$0xff]
        %v689 = vld [vmem:[#allocation5 + $0x170] sm:$0xff]
        %v690 = vld [vmem:[#allocation5 + $0x178] sm:$0xff]
        %v691 = vld [vmem:[%s4] sm:$0x3f]
        %v693 = vlaneseq
        %v694 = vshrl.u32 %v693, 7
        %v695 = vsub.s32 0, %v694
        %v696 = vrot.slane %v691, %v695
        %v697 = vlaneseq
        %v698 = vshrl.u32 %v697, 7
        %v699 = vsub.s32 1, %v698
        %v700 = vrot.slane %v691, %v699
        %v701 = vlaneseq
        %v702 = vshrl.u32 %v701, 7
        %v703 = vsub.s32 2, %v702
        %v704 = vrot.slane %v691, %v703
        %v705 = vlaneseq
        %v706 = vshrl.u32 %v705, 7
        %v707 = vsub.s32 3, %v706
        %v708 = vrot.slane %v691, %v707
        %v709 = vlaneseq
        %v710 = vshrl.u32 %v709, 7
        %v711 = vsub.s32 4, %v710
        %v712 = vrot.slane %v691, %v711
        %v713 = vlaneseq
        %v714 = vshrl.u32 %v713, 7
        %v715 = vsub.s32 5, %v714
        %v716 = vrot.slane %v691, %v715
        %v771 = vunpack.c.l.b16 %v643
        %v772 = vunpack.c.h.b16 %v643
        %v773 = vunpack.c.l.b16 %v644
        %v774 = vunpack.c.h.b16 %v644
        %v775 = vunpack.c.l.b16 %v645
        %v776 = vunpack.c.h.b16 %v645
        %v777 = vunpack.c.l.b16 %v646
        %v778 = vunpack.c.h.b16 %v646
        %v779 = vunpack.c.l.b16 %v647
        %v780 = vunpack.c.h.b16 %v647
        %v781 = vunpack.c.l.b16 %v648
        %v782 = vunpack.c.h.b16 %v648
        %v783 = vunpack.c.l.b16 %v649
        %v784 = vunpack.c.h.b16 %v649
        %v785 = vunpack.c.l.b16 %v650
        %v786 = vunpack.c.h.b16 %v650
        %v787 = vunpack.c.l.b16 %v651
        %v788 = vunpack.c.h.b16 %v651
        %v789 = vunpack.c.l.b16 %v652
        %v790 = vunpack.c.h.b16 %v652
        %v791 = vunpack.c.l.b16 %v653
        %v792 = vunpack.c.h.b16 %v653
        %v793 = vunpack.c.l.b16 %v654
        %v794 = vunpack.c.h.b16 %v654
        %v795 = vunpack.c.l.b16 %v655
        %v796 = vunpack.c.h.b16 %v655
        %v797 = vunpack.c.l.b16 %v656
        %v798 = vunpack.c.h.b16 %v656
        %v799 = vunpack.c.l.b16 %v657
        %v800 = vunpack.c.h.b16 %v657
        %v801 = vunpack.c.l.b16 %v658
        %v802 = vunpack.c.h.b16 %v658
        %v803 = vunpack.c.l.b16 %v659
        %v804 = vunpack.c.h.b16 %v659
        %v805 = vunpack.c.l.b16 %v660
        %v806 = vunpack.c.h.b16 %v660
        %v807 = vunpack.c.l.b16 %v661
        %v808 = vunpack.c.h.b16 %v661
        %v809 = vunpack.c.l.b16 %v662
        %v810 = vunpack.c.h.b16 %v662
        %v811 = vunpack.c.l.b16 %v663
        %v812 = vunpack.c.h.b16 %v663
        %v813 = vunpack.c.l.b16 %v664
        %v814 = vunpack.c.h.b16 %v664
        %v815 = vunpack.c.l.b16 %v665
        %v816 = vunpack.c.h.b16 %v665
        %v817 = vunpack.c.l.b16 %v666
        %v818 = vunpack.c.h.b16 %v666
        %v819 = vunpack.c.l.b16 %v667
        %v820 = vunpack.c.h.b16 %v667
        %v821 = vunpack.c.l.b16 %v668
        %v822 = vunpack.c.h.b16 %v668
        %v823 = vunpack.c.l.b16 %v669
        %v824 = vunpack.c.h.b16 %v669
        %v825 = vunpack.c.l.b16 %v670
        %v826 = vunpack.c.h.b16 %v670
        %v827 = vunpack.c.l.b16 %v671
        %v828 = vunpack.c.h.b16 %v671
        %v829 = vunpack.c.l.b16 %v672
        %v830 = vunpack.c.h.b16 %v672
        %v831 = vunpack.c.l.b16 %v673
        %v832 = vunpack.c.h.b16 %v673
        %v833 = vunpack.c.l.b16 %v674
        %v834 = vunpack.c.h.b16 %v674
        %v835 = vunpack.c.l.b16 %v675
        %v836 = vunpack.c.h.b16 %v675
        %v837 = vunpack.c.l.b16 %v676
        %v838 = vunpack.c.h.b16 %v676
        %v839 = vunpack.c.l.b16 %v677
        %v840 = vunpack.c.h.b16 %v677
        %v841 = vunpack.c.l.b16 %v678
        %v842 = vunpack.c.h.b16 %v678
        %v843 = vunpack.c.l.b16 %v679
        %v844 = vunpack.c.h.b16 %v679
        %v845 = vunpack.c.l.b16 %v680
        %v846 = vunpack.c.h.b16 %v680
        %v847 = vunpack.c.l.b16 %v681
        %v848 = vunpack.c.h.b16 %v681
        %v849 = vunpack.c.l.b16 %v682
        %v850 = vunpack.c.h.b16 %v682
        %v851 = vunpack.c.l.b16 %v683
        %v852 = vunpack.c.h.b16 %v683
        %v853 = vunpack.c.l.b16 %v684
        %v854 = vunpack.c.h.b16 %v684
        %v855 = vunpack.c.l.b16 %v685
        %v856 = vunpack.c.h.b16 %v685
        %v857 = vunpack.c.l.b16 %v686
        %v858 = vunpack.c.h.b16 %v686
        %v859 = vunpack.c.l.b16 %v687
        %v860 = vunpack.c.h.b16 %v687
        %v861 = vunpack.c.l.b16 %v688
        %v862 = vunpack.c.h.b16 %v688
        %v863 = vunpack.c.l.b16 %v689
        %v864 = vunpack.c.h.b16 %v689
        %v865 = vunpack.c.l.b16 %v690
        %v866 = vunpack.c.h.b16 %v690
        %v867 = vpack.c.b16 %v777, %v771
        %v868 = vpack.c.b16 %v778, %v772
        %v869 = vpack.c.b16 %v779, %v773
        %v870 = vpack.c.b16 %v780, %v774
        %v871 = vpack.c.b16 %v781, %v775
        %v872 = vpack.c.b16 %v782, %v776
        %v873 = vpack.c.b16 %v789, %v783
        %v874 = vpack.c.b16 %v790, %v784
        %v875 = vpack.c.b16 %v791, %v785
        %v876 = vpack.c.b16 %v792, %v786
        %v877 = vpack.c.b16 %v793, %v787
        %v878 = vpack.c.b16 %v794, %v788
        %v879 = vpack.c.b16 %v801, %v795
        %v880 = vpack.c.b16 %v802, %v796
        %v881 = vpack.c.b16 %v803, %v797
        %v882 = vpack.c.b16 %v804, %v798
        %v883 = vpack.c.b16 %v805, %v799
        %v884 = vpack.c.b16 %v806, %v800
        %v885 = vpack.c.b16 %v813, %v807
        %v886 = vpack.c.b16 %v814, %v808
        %v887 = vpack.c.b16 %v815, %v809
        %v888 = vpack.c.b16 %v816, %v810
        %v889 = vpack.c.b16 %v817, %v811
        %v890 = vpack.c.b16 %v818, %v812
        %v891 = vpack.c.b16 %v825, %v819
        %v892 = vpack.c.b16 %v826, %v820
        %v893 = vpack.c.b16 %v827, %v821
        %v894 = vpack.c.b16 %v828, %v822
        %v895 = vpack.c.b16 %v829, %v823
        %v896 = vpack.c.b16 %v830, %v824
        %v897 = vpack.c.b16 %v837, %v831
        %v898 = vpack.c.b16 %v838, %v832
        %v899 = vpack.c.b16 %v839, %v833
        %v900 = vpack.c.b16 %v840, %v834
        %v901 = vpack.c.b16 %v841, %v835
        %v902 = vpack.c.b16 %v842, %v836
        %v903 = vpack.c.b16 %v849, %v843
        %v904 = vpack.c.b16 %v850, %v844
        %v905 = vpack.c.b16 %v851, %v845
        %v906 = vpack.c.b16 %v852, %v846
        %v907 = vpack.c.b16 %v853, %v847
        %v908 = vpack.c.b16 %v854, %v848
        %v909 = vpack.c.b16 %v861, %v855
        %v910 = vpack.c.b16 %v862, %v856
        %v911 = vpack.c.b16 %v863, %v857
        %v912 = vpack.c.b16 %v864, %v858
        %v913 = vpack.c.b16 %v865, %v859
        %v914 = vpack.c.b16 %v866, %v860
        %963 = vmatprep.subr.bf16.mxu0 %v868
        %964 = vmatpush1.bf16.msra.mxu0 %v867
        %965 = vmatprep.subr.bf16.mxu0 %v874
        %966 = vmatpush1.bf16.msra.mxu0 %v873
        %967 = vmatprep.subr.bf16.mxu0 %v880
        %968 = vmatpush1.bf16.msra.mxu0 %v879
        %969 = vmatprep.subr.bf16.mxu0 %v886
        %970 = vmatpush1.bf16.msra.mxu0 %v885
        %971 = vmatprep.subr.bf16.mxu0 %v892
        %972 = vmatpush1.bf16.msra.mxu0 %v891
        %973 = vmatprep.subr.bf16.mxu0 %v898
        %974 = vmatpush1.bf16.msra.mxu0 %v897
        %975 = vmatprep.subr.bf16.mxu0 %v904
        %976 = vmatpush1.bf16.msra.mxu0 %v903
        %977 = vmatprep.subr.bf16.mxu0 %v910
        %978 = vmatpush1.bf16.msra.mxu0 %v909
        %979 = vmatprep.subr.bf16.mxu0 0
        %980 = vmatpush1.bf16.msra.mxu0 0
        %981 = vmatprep.subr.bf16.mxu0 0
        %982 = vmatpush1.bf16.msra.mxu0 0
        %983 = vmatprep.subr.bf16.mxu0 0
        %984 = vmatpush1.bf16.msra.mxu0 0
        %985 = vmatprep.subr.bf16.mxu0 0
        %986 = vmatpush1.bf16.msra.mxu0 0
        %987 = vmatprep.subr.bf16.mxu0 0
        %988 = vmatpush1.bf16.msra.mxu0 0
        %989 = vmatprep.subr.bf16.mxu0 0
        %990 = vmatpush1.bf16.msra.mxu0 0
        %991 = vmatprep.subr.bf16.mxu0 0
        %992 = vmatpush1.bf16.msra.mxu0 0
        %993 = vmatprep.subr.bf16.mxu0 0
        %994 = vmatpush1.bf16.msra.mxu0 0
        %995 = vmatprep.mubr.bf16.mxu0 0
        %996 = vmatmul.mubr.bf16.gmra.mrb[0].mxu0 %v627
        %v997 = vpop.f32.mrb[0].mxu0
        %v998 = vadd.f32 %v696, %v997
        %v999 = vpop.f32.mrb[0].mxu0
        %v1000 = vadd.f32 %v700, %v999
        %v1001 = vpop.f32.mrb[0].mxu0
        %v1002 = vadd.f32 %v696, %v1001
        %v1003 = vpop.f32.mrb[0].mxu0
        %v1004 = vadd.f32 %v700, %v1003
        %1005 = vmatprep.mubr.bf16.mxu0 0
        %1006 = vmatmul.mubr.bf16.gmra.mrb[0].mxu0 %v628
        %v1007 = vpop.f32.mrb[0].mxu0
        %v1008 = vadd.f32 %v696, %v1007
        %v1009 = vpop.f32.mrb[0].mxu0
        %v1010 = vadd.f32 %v700, %v1009
        %v1011 = vpop.f32.mrb[0].mxu0
        %v1012 = vadd.f32 %v696, %v1011
        %v1013 = vpop.f32.mrb[0].mxu0
        %v1014 = vadd.f32 %v700, %v1013
        %1015 = vmatprep.mubr.bf16.mxu0 0
        %1016 = vmatmul.mubr.bf16.gmra.mrb[0].mxu0 %v629
        %v1017 = vpop.f32.mrb[0].mxu0
        %v1018 = vadd.f32 %v696, %v1017
        %v1019 = vpop.f32.mrb[0].mxu0
        %v1020 = vadd.f32 %v700, %v1019
        %v1021 = vpop.f32.mrb[0].mxu0
        %v1022 = vadd.f32 %v696, %v1021
        %v1023 = vpop.f32.mrb[0].mxu0
        %v1024 = vadd.f32 %v700, %v1023
        %1025 = vmatprep.mubr.bf16.mxu0 0
        %1026 = vmatmul.mubr.bf16.gmra.mrb[0].mxu0 %v630
        %v1027 = vpop.f32.mrb[0].mxu0
        %v1028 = vadd.f32 %v696, %v1027
        %v1029 = vpop.f32.mrb[0].mxu0
        %v1030 = vadd.f32 %v700, %v1029
        %v1031 = vpop.f32.mrb[0].mxu0
        %v1032 = vadd.f32 %v696, %v1031
        %v1033 = vpop.f32.mrb[0].mxu0
        %v1034 = vadd.f32 %v700, %v1033
        %1035 = vmatprep.mubr.bf16.mxu0 0
        %1036 = vmatmul.mubr.bf16.gmra.mrb[0].mxu0 %v631
        %v1037 = vpop.f32.mrb[0].mxu0
        %v1038 = vadd.f32 %v696, %v1037
        %v1039 = vpop.f32.mrb[0].mxu0
        %v1040 = vadd.f32 %v700, %v1039
        %v1041 = vpop.f32.mrb[0].mxu0
        %v1042 = vadd.f32 %v696, %v1041
        %v1043 = vpop.f32.mrb[0].mxu0
        %v1044 = vadd.f32 %v700, %v1043
        %1045 = vmatprep.mubr.bf16.mxu0 0
        %1046 = vmatmul.mubr.bf16.gmra.mrb[0].mxu0 %v632
        %v1047 = vpop.f32.mrb[0].mxu0
        %v1048 = vadd.f32 %v696, %v1047
        %v1049 = vpop.f32.mrb[0].mxu0
        %v1050 = vadd.f32 %v700, %v1049
        %v1051 = vpop.f32.mrb[0].mxu0
        %v1052 = vadd.f32 %v696, %v1051
        %v1053 = vpop.f32.mrb[0].mxu0
        %v1054 = vadd.f32 %v700, %v1053
        %1055 = vmatprep.mubr.bf16.mxu0 0
        %1056 = vmatmul.mubr.bf16.gmra.mrb[0].mxu0 %v633
        %v1057 = vpop.f32.mrb[0].mxu0
        %v1058 = vadd.f32 %v696, %v1057
        %v1059 = vpop.f32.mrb[0].mxu0
        %v1060 = vadd.f32 %v700, %v1059
        %v1061 = vpop.f32.mrb[0].mxu0
        %v1062 = vadd.f32 %v696, %v1061
        %v1063 = vpop.f32.mrb[0].mxu0
        %v1064 = vadd.f32 %v700, %v1063
        %1065 = vmatprep.mubr.bf16.mxu0 0
        %1066 = vmatmul.mubr.bf16.gmra.mrb[0].mxu0 %v634
        %v1067 = vpop.f32.mrb[0].mxu0
        %v1068 = vadd.f32 %v696, %v1067
        %v1069 = vpop.f32.mrb[0].mxu0
        %v1070 = vadd.f32 %v700, %v1069
        %v1071 = vpop.f32.mrb[0].mxu0
        %v1072 = vadd.f32 %v696, %v1071
        %v1073 = vpop.f32.mrb[0].mxu0
        %v1074 = vadd.f32 %v700, %v1073
        %1075 = vmatprep.mubr.bf16.mxu0 0
        %1076 = vmatmul.mubr.bf16.gmra.mrb[0].mxu0 %v635
        %v1077 = vpop.f32.mrb[0].mxu0
        %v1078 = vadd.f32 %v696, %v1077
        %v1079 = vpop.f32.mrb[0].mxu0
        %v1080 = vadd.f32 %v700, %v1079
        %v1081 = vpop.f32.mrb[0].mxu0
        %v1082 = vadd.f32 %v696, %v1081
        %v1083 = vpop.f32.mrb[0].mxu0
        %v1084 = vadd.f32 %v700, %v1083
        %1085 = vmatprep.mubr.bf16.mxu0 0
        %1086 = vmatmul.mubr.bf16.gmra.mrb[0].mxu0 %v636
        %v1087 = vpop.f32.mrb[0].mxu0
        %v1088 = vadd.f32 %v696, %v1087
        %v1089 = vpop.f32.mrb[0].mxu0
        %v1090 = vadd.f32 %v700, %v1089
        %v1091 = vpop.f32.mrb[0].mxu0
        %v1092 = vadd.f32 %v696, %v1091
        %v1093 = vpop.f32.mrb[0].mxu0
        %v1094 = vadd.f32 %v700, %v1093
        %1095 = vmatprep.mubr.bf16.mxu0 0
        %1096 = vmatmul.mubr.bf16.gmra.mrb[0].mxu0 %v637
        %v1097 = vpop.f32.mrb[0].mxu0
        %v1098 = vadd.f32 %v696, %v1097
        %v1099 = vpop.f32.mrb[0].mxu0
        %v1100 = vadd.f32 %v700, %v1099
        %v1101 = vpop.f32.mrb[0].mxu0
        %v1102 = vadd.f32 %v696, %v1101
        %v1103 = vpop.f32.mrb[0].mxu0
        %v1104 = vadd.f32 %v700, %v1103
        %1105 = vmatprep.mubr.bf16.mxu0 0
        %1106 = vmatmul.mubr.bf16.gmra.mrb[0].mxu0 %v638
        %v1107 = vpop.f32.mrb[0].mxu0
        %v1108 = vadd.f32 %v696, %v1107
        %v1109 = vpop.f32.mrb[0].mxu0
        %v1110 = vadd.f32 %v700, %v1109
        %v1111 = vpop.f32.mrb[0].mxu0
        %v1112 = vadd.f32 %v696, %v1111
        %v1113 = vpop.f32.mrb[0].mxu0
        %v1114 = vadd.f32 %v700, %v1113
        %1115 = vmatprep.mubr.bf16.mxu0 0
        %1116 = vmatmul.mubr.bf16.gmra.mrb[0].mxu0 %v639
        %v1117 = vpop.f32.mrb[0].mxu0
        %v1118 = vadd.f32 %v696, %v1117
        %v1119 = vpop.f32.mrb[0].mxu0
        %v1120 = vadd.f32 %v700, %v1119
        %v1121 = vpop.f32.mrb[0].mxu0
        %v1122 = vadd.f32 %v696, %v1121
        %v1123 = vpop.f32.mrb[0].mxu0
        %v1124 = vadd.f32 %v700, %v1123
        %1125 = vmatprep.mubr.bf16.mxu0 0
        %1126 = vmatmul.mubr.bf16.gmra.mrb[0].mxu0 %v640
        %v1127 = vpop.f32.mrb[0].mxu0
        %v1128 = vadd.f32 %v696, %v1127
        %v1129 = vpop.f32.mrb[0].mxu0
        %v1130 = vadd.f32 %v700, %v1129
        %v1131 = vpop.f32.mrb[0].mxu0
        %v1132 = vadd.f32 %v696, %v1131
        %v1133 = vpop.f32.mrb[0].mxu0
        %v1134 = vadd.f32 %v700, %v1133
        %1135 = vmatprep.mubr.bf16.mxu0 0
        %1136 = vmatmul.mubr.bf16.gmra.mrb[0].mxu0 %v641
        %v1137 = vpop.f32.mrb[0].mxu0
        %v1138 = vadd.f32 %v696, %v1137
        %v1139 = vpop.f32.mrb[0].mxu0
        %v1140 = vadd.f32 %v700, %v1139
        %v1141 = vpop.f32.mrb[0].mxu0
        %v1142 = vadd.f32 %v696, %v1141
        %v1143 = vpop.f32.mrb[0].mxu0
        %v1144 = vadd.f32 %v700, %v1143
        %1145 = vmatprep.mubr.bf16.mxu0 0
        %1146 = vmatmul.mubr.bf16.gmra.mrb[0].mxu0 %v642
        %v1147 = vpop.f32.mrb[0].mxu0
        %v1148 = vadd.f32 %v696, %v1147
        %v1149 = vpop.f32.mrb[0].mxu0
        %v1150 = vadd.f32 %v700, %v1149
        %v1151 = vpop.f32.mrb[0].mxu0
        %v1152 = vadd.f32 %v696, %v1151
        %v1153 = vpop.f32.mrb[0].mxu0
        %v1154 = vadd.f32 %v700, %v1153
        %1155 = vdwg.mxu0
        %1156 = vmatprep.subr.bf16.mxu0 %v870
        %1157 = vmatpush1.bf16.msra.mxu0 %v869
        %1158 = vmatprep.subr.bf16.mxu0 %v876
        %1159 = vmatpush1.bf16.msra.mxu0 %v875
        %1160 = vmatprep.subr.bf16.mxu0 %v882
        %1161 = vmatpush1.bf16.msra.mxu0 %v881
        %1162 = vmatprep.subr.bf16.mxu0 %v888
        %1163 = vmatpush1.bf16.msra.mxu0 %v887
        %1164 = vmatprep.subr.bf16.mxu0 %v894
        %1165 = vmatpush1.bf16.msra.mxu0 %v893
        %1166 = vmatprep.subr.bf16.mxu0 %v900
        %1167 = vmatpush1.bf16.msra.mxu0 %v899
        %1168 = vmatprep.subr.bf16.mxu0 %v906
        %1169 = vmatpush1.bf16.msra.mxu0 %v905
        %1170 = vmatprep.subr.bf16.mxu0 %v912
        %1171 = vmatpush1.bf16.msra.mxu0 %v911
        %1172 = vmatprep.subr.bf16.mxu0 0
        %1173 = vmatpush1.bf16.msra.mxu0 0
        %1174 = vmatprep.subr.bf16.mxu0 0
        %1175 = vmatpush1.bf16.msra.mxu0 0
        %1176 = vmatprep.subr.bf16.mxu0 0
        %1177 = vmatpush1.bf16.msra.mxu0 0
        %1178 = vmatprep.subr.bf16.mxu0 0
        %1179 = vmatpush1.bf16.msra.mxu0 0
        %1180 = vmatprep.subr.bf16.mxu0 0
        %1181 = vmatpush1.bf16.msra.mxu0 0
        %1182 = vmatprep.subr.bf16.mxu0 0
        %1183 = vmatpush1.bf16.msra.mxu0 0
        %1184 = vmatprep.subr.bf16.mxu0 0
        %1185 = vmatpush1.bf16.msra.mxu0 0
        %1186 = vmatprep.subr.bf16.mxu0 0
        %1187 = vmatpush1.bf16.msra.mxu0 0
        %1188 = vmatprep.mubr.bf16.mxu0 0
        %1189 = vmatmul.mubr.bf16.gmra.mrb[0].mxu0 %v627
        %v1190 = vpop.f32.mrb[0].mxu0
        %v1191 = vadd.f32 %v704, %v1190
        %v1192 = vpop.f32.mrb[0].mxu0
        %v1193 = vadd.f32 %v708, %v1192
        %v1194 = vpop.f32.mrb[0].mxu0
        %v1195 = vadd.f32 %v704, %v1194
        %v1196 = vpop.f32.mrb[0].mxu0
        %v1197 = vadd.f32 %v708, %v1196
        %1198 = vmatprep.mubr.bf16.mxu0 0
        %1199 = vmatmul.mubr.bf16.gmra.mrb[0].mxu0 %v628
        %v1200 = vpop.f32.mrb[0].mxu0
        %v1201 = vadd.f32 %v704, %v1200
        %v1202 = vpop.f32.mrb[0].mxu0
        %v1203 = vadd.f32 %v708, %v1202
        %v1204 = vpop.f32.mrb[0].mxu0
        %v1205 = vadd.f32 %v704, %v1204
        %v1206 = vpop.f32.mrb[0].mxu0
        %v1207 = vadd.f32 %v708, %v1206
        %1208 = vmatprep.mubr.bf16.mxu0 0
        %1209 = vmatmul.mubr.bf16.gmra.mrb[0].mxu0 %v629
        %v1210 = vpop.f32.mrb[0].mxu0
        %v1211 = vadd.f32 %v704, %v1210
        %v1212 = vpop.f32.mrb[0].mxu0
        %v1213 = vadd.f32 %v708, %v1212
        %v1214 = vpop.f32.mrb[0].mxu0
        %v1215 = vadd.f32 %v704, %v1214
        %v1216 = vpop.f32.mrb[0].mxu0
        %v1217 = vadd.f32 %v708, %v1216
        %1218 = vmatprep.mubr.bf16.mxu0 0
        %1219 = vmatmul.mubr.bf16.gmra.mrb[0].mxu0 %v630
        %v1220 = vpop.f32.mrb[0].mxu0
        %v1221 = vadd.f32 %v704, %v1220
        %v1222 = vpop.f32.mrb[0].mxu0
        %v1223 = vadd.f32 %v708, %v1222
        %v1224 = vpop.f32.mrb[0].mxu0
        %v1225 = vadd.f32 %v704, %v1224
        %v1226 = vpop.f32.mrb[0].mxu0
        %v1227 = vadd.f32 %v708, %v1226
        %1228 = vmatprep.mubr.bf16.mxu0 0
        %1229 = vmatmul.mubr.bf16.gmra.mrb[0].mxu0 %v631
        %v1230 = vpop.f32.mrb[0].mxu0
        %v1231 = vadd.f32 %v704, %v1230
        %v1232 = vpop.f32.mrb[0].mxu0
        %v1233 = vadd.f32 %v708, %v1232
        %v1234 = vpop.f32.mrb[0].mxu0
        %v1235 = vadd.f32 %v704, %v1234
        %v1236 = vpop.f32.mrb[0].mxu0
        %v1237 = vadd.f32 %v708, %v1236
        %1238 = vmatprep.mubr.bf16.mxu0 0
        %1239 = vmatmul.mubr.bf16.gmra.mrb[0].mxu0 %v632
        %v1240 = vpop.f32.mrb[0].mxu0
        %v1241 = vadd.f32 %v704, %v1240
        %v1242 = vpop.f32.mrb[0].mxu0
        %v1243 = vadd.f32 %v708, %v1242
        %v1244 = vpop.f32.mrb[0].mxu0
        %v1245 = vadd.f32 %v704, %v1244
        %v1246 = vpop.f32.mrb[0].mxu0
        %v1247 = vadd.f32 %v708, %v1246
        %1248 = vmatprep.mubr.bf16.mxu0 0
        %1249 = vmatmul.mubr.bf16.gmra.mrb[0].mxu0 %v633
        %v1250 = vpop.f32.mrb[0].mxu0
        %v1251 = vadd.f32 %v704, %v1250
        %v1252 = vpop.f32.mrb[0].mxu0
        %v1253 = vadd.f32 %v708, %v1252
        %v1254 = vpop.f32.mrb[0].mxu0
        %v1255 = vadd.f32 %v704, %v1254
        %v1256 = vpop.f32.mrb[0].mxu0
        %v1257 = vadd.f32 %v708, %v1256
        %1258 = vmatprep.mubr.bf16.mxu0 0
        %1259 = vmatmul.mubr.bf16.gmra.mrb[0].mxu0 %v634
        %v1260 = vpop.f32.mrb[0].mxu0
        %v1261 = vadd.f32 %v704, %v1260
        %v1262 = vpop.f32.mrb[0].mxu0
        %v1263 = vadd.f32 %v708, %v1262
        %v1264 = vpop.f32.mrb[0].mxu0
        %v1265 = vadd.f32 %v704, %v1264
        %v1266 = vpop.f32.mrb[0].mxu0
        %v1267 = vadd.f32 %v708, %v1266
        %1268 = vmatprep.mubr.bf16.mxu0 0
        %1269 = vmatmul.mubr.bf16.gmra.mrb[0].mxu0 %v635
        %v1270 = vpop.f32.mrb[0].mxu0
        %v1271 = vadd.f32 %v704, %v1270
        %v1272 = vpop.f32.mrb[0].mxu0
        %v1273 = vadd.f32 %v708, %v1272
        %v1274 = vpop.f32.mrb[0].mxu0
        %v1275 = vadd.f32 %v704, %v1274
        %v1276 = vpop.f32.mrb[0].mxu0
        %v1277 = vadd.f32 %v708, %v1276
        %1278 = vmatprep.mubr.bf16.mxu0 0
        %1279 = vmatmul.mubr.bf16.gmra.mrb[0].mxu0 %v636
        %v1280 = vpop.f32.mrb[0].mxu0
        %v1281 = vadd.f32 %v704, %v1280
        %v1282 = vpop.f32.mrb[0].mxu0
        %v1283 = vadd.f32 %v708, %v1282
        %v1284 = vpop.f32.mrb[0].mxu0
        %v1285 = vadd.f32 %v704, %v1284
        %v1286 = vpop.f32.mrb[0].mxu0
        %v1287 = vadd.f32 %v708, %v1286
        %1288 = vmatprep.mubr.bf16.mxu0 0
        %1289 = vmatmul.mubr.bf16.gmra.mrb[0].mxu0 %v637
        %v1290 = vpop.f32.mrb[0].mxu0
        %v1291 = vadd.f32 %v704, %v1290
        %v1292 = vpop.f32.mrb[0].mxu0
        %v1293 = vadd.f32 %v708, %v1292
        %v1294 = vpop.f32.mrb[0].mxu0
        %v1295 = vadd.f32 %v704, %v1294
        %v1296 = vpop.f32.mrb[0].mxu0
        %v1297 = vadd.f32 %v708, %v1296
        %1298 = vmatprep.mubr.bf16.mxu0 0
        %1299 = vmatmul.mubr.bf16.gmra.mrb[0].mxu0 %v638
        %v1300 = vpop.f32.mrb[0].mxu0
        %v1301 = vadd.f32 %v704, %v1300
        %v1302 = vpop.f32.mrb[0].mxu0
        %v1303 = vadd.f32 %v708, %v1302
        %v1304 = vpop.f32.mrb[0].mxu0
        %v1305 = vadd.f32 %v704, %v1304
        %v1306 = vpop.f32.mrb[0].mxu0
        %v1307 = vadd.f32 %v708, %v1306
        %1308 = vmatprep.mubr.bf16.mxu0 0
        %1309 = vmatmul.mubr.bf16.gmra.mrb[0].mxu0 %v639
        %v1310 = vpop.f32.mrb[0].mxu0
        %v1311 = vadd.f32 %v704, %v1310
        %v1312 = vpop.f32.mrb[0].mxu0
        %v1313 = vadd.f32 %v708, %v1312
        %v1314 = vpop.f32.mrb[0].mxu0
        %v1315 = vadd.f32 %v704, %v1314
        %v1316 = vpop.f32.mrb[0].mxu0
        %v1317 = vadd.f32 %v708, %v1316
        %1318 = vmatprep.mubr.bf16.mxu0 0
        %1319 = vmatmul.mubr.bf16.gmra.mrb[0].mxu0 %v640
        %v1320 = vpop.f32.mrb[0].mxu0
        %v1321 = vadd.f32 %v704, %v1320
        %v1322 = vpop.f32.mrb[0].mxu0
        %v1323 = vadd.f32 %v708, %v1322
        %v1324 = vpop.f32.mrb[0].mxu0
        %v1325 = vadd.f32 %v704, %v1324
        %v1326 = vpop.f32.mrb[0].mxu0
        %v1327 = vadd.f32 %v708, %v1326
        %1328 = vmatprep.mubr.bf16.mxu0 0
        %1329 = vmatmul.mubr.bf16.gmra.mrb[0].mxu0 %v641
        %v1330 = vpop.f32.mrb[0].mxu0
        %v1331 = vadd.f32 %v704, %v1330
        %v1332 = vpop.f32.mrb[0].mxu0
        %v1333 = vadd.f32 %v708, %v1332
        %v1334 = vpop.f32.mrb[0].mxu0
        %v1335 = vadd.f32 %v704, %v1334
        %v1336 = vpop.f32.mrb[0].mxu0
        %v1337 = vadd.f32 %v708, %v1336
        %1338 = vmatprep.mubr.bf16.mxu0 0
        %1339 = vmatmul.mubr.bf16.gmra.mrb[0].mxu0 %v642
        %v1340 = vpop.f32.mrb[0].mxu0
        %v1341 = vadd.f32 %v704, %v1340
        %v1342 = vpop.f32.mrb[0].mxu0
        %v1343 = vadd.f32 %v708, %v1342
        %v1344 = vpop.f32.mrb[0].mxu0
        %v1345 = vadd.f32 %v704, %v1344
        %v1346 = vpop.f32.mrb[0].mxu0
        %v1347 = vadd.f32 %v708, %v1346
        %1348 = vdwg.mxu0
        %1349 = vmatprep.subr.bf16.mxu0 %v872
        %1350 = vmatpush1.bf16.msra.mxu0 %v871
        %1351 = vmatprep.subr.bf16.mxu0 %v878
        %1352 = vmatpush1.bf16.msra.mxu0 %v877
        %1353 = vmatprep.subr.bf16.mxu0 %v884
        %1354 = vmatpush1.bf16.msra.mxu0 %v883
        %1355 = vmatprep.subr.bf16.mxu0 %v890
        %1356 = vmatpush1.bf16.msra.mxu0 %v889
        %1357 = vmatprep.subr.bf16.mxu0 %v896
        %1358 = vmatpush1.bf16.msra.mxu0 %v895
        %1359 = vmatprep.subr.bf16.mxu0 %v902
        %1360 = vmatpush1.bf16.msra.mxu0 %v901
        %1361 = vmatprep.subr.bf16.mxu0 %v908
        %1362 = vmatpush1.bf16.msra.mxu0 %v907
        %1363 = vmatprep.subr.bf16.mxu0 %v914
        %1364 = vmatpush1.bf16.msra.mxu0 %v913
        %1365 = vmatprep.subr.bf16.mxu0 0
        %1366 = vmatpush1.bf16.msra.mxu0 0
        %1367 = vmatprep.subr.bf16.mxu0 0
        %1368 = vmatpush1.bf16.msra.mxu0 0
        %1369 = vmatprep.subr.bf16.mxu0 0
        %1370 = vmatpush1.bf16.msra.mxu0 0
        %1371 = vmatprep.subr.bf16.mxu0 0
        %1372 = vmatpush1.bf16.msra.mxu0 0
        %1373 = vmatprep.subr.bf16.mxu0 0
        %1374 = vmatpush1.bf16.msra.mxu0 0
        %1375 = vmatprep.subr.bf16.mxu0 0
        %1376 = vmatpush1.bf16.msra.mxu0 0
        %1377 = vmatprep.subr.bf16.mxu0 0
        %1378 = vmatpush1.bf16.msra.mxu0 0
        %1379 = vmatprep.subr.bf16.mxu0 0
        %1380 = vmatpush1.bf16.msra.mxu0 0
        %1381 = vmatprep.mubr.bf16.mxu0 0
        %1382 = vmatmul.mubr.bf16.gmra.mrb[0].mxu0 %v627
        %v1383 = vpop.f32.mrb[0].mxu0
        %v1384 = vadd.f32 %v712, %v1383
        %v1385 = vpop.f32.mrb[0].mxu0
        %v1386 = vadd.f32 %v716, %v1385
        %v1387 = vpop.f32.mrb[0].mxu0
        %v1388 = vadd.f32 %v712, %v1387
        %v1389 = vpop.f32.mrb[0].mxu0
        %v1390 = vadd.f32 %v716, %v1389
        %1391 = vmatprep.mubr.bf16.mxu0 0
        %1392 = vmatmul.mubr.bf16.gmra.mrb[0].mxu0 %v628
        %v1393 = vpop.f32.mrb[0].mxu0
        %v1394 = vadd.f32 %v712, %v1393
        %v1395 = vpop.f32.mrb[0].mxu0
        %v1396 = vadd.f32 %v716, %v1395
        %v1397 = vpop.f32.mrb[0].mxu0
        %v1398 = vadd.f32 %v712, %v1397
        %v1399 = vpop.f32.mrb[0].mxu0
        %v1400 = vadd.f32 %v716, %v1399
        %1401 = vmatprep.mubr.bf16.mxu0 0
        %1402 = vmatmul.mubr.bf16.gmra.mrb[0].mxu0 %v629
        %v1403 = vpop.f32.mrb[0].mxu0
        %v1404 = vadd.f32 %v712, %v1403
        %v1405 = vpop.f32.mrb[0].mxu0
        %v1406 = vadd.f32 %v716, %v1405
        %v1407 = vpop.f32.mrb[0].mxu0
        %v1408 = vadd.f32 %v712, %v1407
        %v1409 = vpop.f32.mrb[0].mxu0
        %v1410 = vadd.f32 %v716, %v1409
        %1411 = vmatprep.mubr.bf16.mxu0 0
        %1412 = vmatmul.mubr.bf16.gmra.mrb[0].mxu0 %v630
        %v1413 = vpop.f32.mrb[0].mxu0
        %v1414 = vadd.f32 %v712, %v1413
        %v1415 = vpop.f32.mrb[0].mxu0
        %v1416 = vadd.f32 %v716, %v1415
        %v1417 = vpop.f32.mrb[0].mxu0
        %v1418 = vadd.f32 %v712, %v1417
        %v1419 = vpop.f32.mrb[0].mxu0
        %v1420 = vadd.f32 %v716, %v1419
        %1421 = vmatprep.mubr.bf16.mxu0 0
        %1422 = vmatmul.mubr.bf16.gmra.mrb[0].mxu0 %v631
        %v1423 = vpop.f32.mrb[0].mxu0
        %v1424 = vadd.f32 %v712, %v1423
        %v1425 = vpop.f32.mrb[0].mxu0
        %v1426 = vadd.f32 %v716, %v1425
        %v1427 = vpop.f32.mrb[0].mxu0
        %v1428 = vadd.f32 %v712, %v1427
        %v1429 = vpop.f32.mrb[0].mxu0
        %v1430 = vadd.f32 %v716, %v1429
        %1431 = vmatprep.mubr.bf16.mxu0 0
        %1432 = vmatmul.mubr.bf16.gmra.mrb[0].mxu0 %v632
        %v1433 = vpop.f32.mrb[0].mxu0
        %v1434 = vadd.f32 %v712, %v1433
        %v1435 = vpop.f32.mrb[0].mxu0
        %v1436 = vadd.f32 %v716, %v1435
        %v1437 = vpop.f32.mrb[0].mxu0
        %v1438 = vadd.f32 %v712, %v1437
        %v1439 = vpop.f32.mrb[0].mxu0
        %v1440 = vadd.f32 %v716, %v1439
        %1441 = vmatprep.mubr.bf16.mxu0 0
        %1442 = vmatmul.mubr.bf16.gmra.mrb[0].mxu0 %v633
        %v1443 = vpop.f32.mrb[0].mxu0
        %v1444 = vadd.f32 %v712, %v1443
        %v1445 = vpop.f32.mrb[0].mxu0
        %v1446 = vadd.f32 %v716, %v1445
        %v1447 = vpop.f32.mrb[0].mxu0
        %v1448 = vadd.f32 %v712, %v1447
        %v1449 = vpop.f32.mrb[0].mxu0
        %v1450 = vadd.f32 %v716, %v1449
        %1451 = vmatprep.mubr.bf16.mxu0 0
        %1452 = vmatmul.mubr.bf16.gmra.mrb[0].mxu0 %v634
        %v1453 = vpop.f32.mrb[0].mxu0
        %v1454 = vadd.f32 %v712, %v1453
        %v1455 = vpop.f32.mrb[0].mxu0
        %v1456 = vadd.f32 %v716, %v1455
        %v1457 = vpop.f32.mrb[0].mxu0
        %v1458 = vadd.f32 %v712, %v1457
        %v1459 = vpop.f32.mrb[0].mxu0
        %v1460 = vadd.f32 %v716, %v1459
        %1461 = vmatprep.mubr.bf16.mxu0 0
        %1462 = vmatmul.mubr.bf16.gmra.mrb[0].mxu0 %v635
        %v1463 = vpop.f32.mrb[0].mxu0
        %v1464 = vadd.f32 %v712, %v1463
        %v1465 = vpop.f32.mrb[0].mxu0
        %v1466 = vadd.f32 %v716, %v1465
        %v1467 = vpop.f32.mrb[0].mxu0
        %v1468 = vadd.f32 %v712, %v1467
        %v1469 = vpop.f32.mrb[0].mxu0
        %v1470 = vadd.f32 %v716, %v1469
        %1471 = vmatprep.mubr.bf16.mxu0 0
        %1472 = vmatmul.mubr.bf16.gmra.mrb[0].mxu0 %v636
        %v1473 = vpop.f32.mrb[0].mxu0
        %v1474 = vadd.f32 %v712, %v1473
        %v1475 = vpop.f32.mrb[0].mxu0
        %v1476 = vadd.f32 %v716, %v1475
        %v1477 = vpop.f32.mrb[0].mxu0
        %v1478 = vadd.f32 %v712, %v1477
        %v1479 = vpop.f32.mrb[0].mxu0
        %v1480 = vadd.f32 %v716, %v1479
        %1481 = vmatprep.mubr.bf16.mxu0 0
        %1482 = vmatmul.mubr.bf16.gmra.mrb[0].mxu0 %v637
        %v1483 = vpop.f32.mrb[0].mxu0
        %v1484 = vadd.f32 %v712, %v1483
        %v1485 = vpop.f32.mrb[0].mxu0
        %v1486 = vadd.f32 %v716, %v1485
        %v1487 = vpop.f32.mrb[0].mxu0
        %v1488 = vadd.f32 %v712, %v1487
        %v1489 = vpop.f32.mrb[0].mxu0
        %v1490 = vadd.f32 %v716, %v1489
        %1491 = vmatprep.mubr.bf16.mxu0 0
        %1492 = vmatmul.mubr.bf16.gmra.mrb[0].mxu0 %v638
        %v1493 = vpop.f32.mrb[0].mxu0
        %v1494 = vadd.f32 %v712, %v1493
        %v1495 = vpop.f32.mrb[0].mxu0
        %v1496 = vadd.f32 %v716, %v1495
        %v1497 = vpop.f32.mrb[0].mxu0
        %v1498 = vadd.f32 %v712, %v1497
        %v1499 = vpop.f32.mrb[0].mxu0
        %v1500 = vadd.f32 %v716, %v1499
        %1501 = vmatprep.mubr.bf16.mxu0 0
        %1502 = vmatmul.mubr.bf16.gmra.mrb[0].mxu0 %v639
        %v1503 = vpop.f32.mrb[0].mxu0
        %v1504 = vadd.f32 %v712, %v1503
        %v1505 = vpop.f32.mrb[0].mxu0
        %v1506 = vadd.f32 %v716, %v1505
        %v1507 = vpop.f32.mrb[0].mxu0
        %v1508 = vadd.f32 %v712, %v1507
        %v1509 = vpop.f32.mrb[0].mxu0
        %v1510 = vadd.f32 %v716, %v1509
        %1511 = vmatprep.mubr.bf16.mxu0 0
        %1512 = vmatmul.mubr.bf16.gmra.mrb[0].mxu0 %v640
        %v1513 = vpop.f32.mrb[0].mxu0
        %v1514 = vadd.f32 %v712, %v1513
        %v1515 = vpop.f32.mrb[0].mxu0
        %v1516 = vadd.f32 %v716, %v1515
        %v1517 = vpop.f32.mrb[0].mxu0
        %v1518 = vadd.f32 %v712, %v1517
        %v1519 = vpop.f32.mrb[0].mxu0
        %v1520 = vadd.f32 %v716, %v1519
        %1521 = vmatprep.mubr.bf16.mxu0 0
        %1522 = vmatmul.mubr.bf16.gmra.mrb[0].mxu0 %v641
        %v1523 = vpop.f32.mrb[0].mxu0
        %v1524 = vadd.f32 %v712, %v1523
        %v1525 = vpop.f32.mrb[0].mxu0
        %v1526 = vadd.f32 %v716, %v1525
        %v1527 = vpop.f32.mrb[0].mxu0
        %v1528 = vadd.f32 %v712, %v1527
        %v1529 = vpop.f32.mrb[0].mxu0
        %v1530 = vadd.f32 %v716, %v1529
        %1531 = vmatprep.mubr.bf16.mxu0 0
        %1532 = vmatmul.mubr.bf16.gmra.mrb[0].mxu0 %v642
        %v1533 = vpop.f32.mrb[0].mxu0
        %v1534 = vadd.f32 %v712, %v1533
        %v1535 = vpop.f32.mrb[0].mxu0
        %v1536 = vadd.f32 %v716, %v1535
        %v1537 = vpop.f32.mrb[0].mxu0
        %v1538 = vadd.f32 %v712, %v1537
        %v1539 = vpop.f32.mrb[0].mxu0
        %v1540 = vadd.f32 %v716, %v1539
        %1541 = vdwg.mxu0
        %v1542 = vpack.c.bf16 %v1002, %v998
        %v1543 = vpack.c.bf16 %v1004, %v1000
        %v1544 = vpack.c.bf16 %v1012, %v1008
        %v1545 = vpack.c.bf16 %v1014, %v1010
        %v1546 = vpack.c.bf16 %v1022, %v1018
        %v1547 = vpack.c.bf16 %v1024, %v1020
        %v1548 = vpack.c.bf16 %v1032, %v1028
        %v1549 = vpack.c.bf16 %v1034, %v1030
        %v1550 = vpack.c.bf16 %v1042, %v1038
        %v1551 = vpack.c.bf16 %v1044, %v1040
        %v1552 = vpack.c.bf16 %v1052, %v1048
        %v1553 = vpack.c.bf16 %v1054, %v1050
        %v1554 = vpack.c.bf16 %v1062, %v1058
        %v1555 = vpack.c.bf16 %v1064, %v1060
        %v1556 = vpack.c.bf16 %v1072, %v1068
        %v1557 = vpack.c.bf16 %v1074, %v1070
        %v1558 = vpack.c.bf16 %v1082, %v1078
        %v1559 = vpack.c.bf16 %v1084, %v1080
        %v1560 = vpack.c.bf16 %v1092, %v1088
        %v1561 = vpack.c.bf16 %v1094, %v1090
        %v1562 = vpack.c.bf16 %v1102, %v1098
        %v1563 = vpack.c.bf16 %v1104, %v1100
        %v1564 = vpack.c.bf16 %v1112, %v1108
        %v1565 = vpack.c.bf16 %v1114, %v1110
        %v1566 = vpack.c.bf16 %v1122, %v1118
        %v1567 = vpack.c.bf16 %v1124, %v1120
        %v1568 = vpack.c.bf16 %v1132, %v1128
        %v1569 = vpack.c.bf16 %v1134, %v1130
        %v1570 = vpack.c.bf16 %v1142, %v1138
        %v1571 = vpack.c.bf16 %v1144, %v1140
        %v1572 = vpack.c.bf16 %v1152, %v1148
        %v1573 = vpack.c.bf16 %v1154, %v1150
        %v1606 = vunpack.c.l.b16 %v1542
        %v1607 = vunpack.c.l.b16 %v1543
        %v1608 = vunpack.c.h.b16 %v1542
        %v1609 = vunpack.c.h.b16 %v1543
        %v1610 = vunpack.c.l.b16 %v1544
        %v1611 = vunpack.c.l.b16 %v1545
        %v1612 = vunpack.c.h.b16 %v1544
        %v1613 = vunpack.c.h.b16 %v1545
        %v1614 = vunpack.c.l.b16 %v1546
        %v1615 = vunpack.c.l.b16 %v1547
        %v1616 = vunpack.c.h.b16 %v1546
        %v1617 = vunpack.c.h.b16 %v1547
        %v1618 = vunpack.c.l.b16 %v1548
        %v1619 = vunpack.c.l.b16 %v1549
        %v1620 = vunpack.c.h.b16 %v1548
        %v1621 = vunpack.c.h.b16 %v1549
        %v1622 = vunpack.c.l.b16 %v1550
        %v1623 = vunpack.c.l.b16 %v1551
        %v1624 = vunpack.c.h.b16 %v1550
        %v1625 = vunpack.c.h.b16 %v1551
        %v1626 = vunpack.c.l.b16 %v1552
        %v1627 = vunpack.c.l.b16 %v1553
        %v1628 = vunpack.c.h.b16 %v1552
        %v1629 = vunpack.c.h.b16 %v1553
        %v1630 = vunpack.c.l.b16 %v1554
        %v1631 = vunpack.c.l.b16 %v1555
        %v1632 = vunpack.c.h.b16 %v1554
        %v1633 = vunpack.c.h.b16 %v1555
        %v1634 = vunpack.c.l.b16 %v1556
        %v1635 = vunpack.c.l.b16 %v1557
        %v1636 = vunpack.c.h.b16 %v1556
        %v1637 = vunpack.c.h.b16 %v1557
        %v1638 = vunpack.c.l.b16 %v1558
        %v1639 = vunpack.c.l.b16 %v1559
        %v1640 = vunpack.c.h.b16 %v1558
        %v1641 = vunpack.c.h.b16 %v1559
        %v1642 = vunpack.c.l.b16 %v1560
        %v1643 = vunpack.c.l.b16 %v1561
        %v1644 = vunpack.c.h.b16 %v1560
        %v1645 = vunpack.c.h.b16 %v1561
        %v1646 = vunpack.c.l.b16 %v1562
        %v1647 = vunpack.c.l.b16 %v1563
        %v1648 = vunpack.c.h.b16 %v1562
        %v1649 = vunpack.c.h.b16 %v1563
        %v1650 = vunpack.c.l.b16 %v1564
        %v1651 = vunpack.c.l.b16 %v1565
        %v1652 = vunpack.c.h.b16 %v1564
        %v1653 = vunpack.c.h.b16 %v1565
        %v1654 = vunpack.c.l.b16 %v1566
        %v1655 = vunpack.c.l.b16 %v1567
        %v1656 = vunpack.c.h.b16 %v1566
        %v1657 = vunpack.c.h.b16 %v1567
        %v1658 = vunpack.c.l.b16 %v1568
        %v1659 = vunpack.c.l.b16 %v1569
        %v1660 = vunpack.c.h.b16 %v1568
        %v1661 = vunpack.c.h.b16 %v1569
        %v1662 = vunpack.c.l.b16 %v1570
        %v1663 = vunpack.c.l.b16 %v1571
        %v1664 = vunpack.c.h.b16 %v1570
        %v1665 = vunpack.c.h.b16 %v1571
        %v1666 = vunpack.c.l.b16 %v1572
        %v1667 = vunpack.c.l.b16 %v1573
        %v1668 = vunpack.c.h.b16 %v1572
        %v1669 = vunpack.c.h.b16 %v1573
        %v1670 = vpack.c.b16 %v1607, %v1606
        %v1671 = vpack.c.b16 %v1609, %v1608
        %v1672 = vpack.c.b16 %v1611, %v1610
        %v1673 = vpack.c.b16 %v1613, %v1612
        %v1674 = vpack.c.b16 %v1615, %v1614
        %v1675 = vpack.c.b16 %v1617, %v1616
        %v1676 = vpack.c.b16 %v1619, %v1618
        %v1677 = vpack.c.b16 %v1621, %v1620
        %v1678 = vpack.c.b16 %v1623, %v1622
        %v1679 = vpack.c.b16 %v1625, %v1624
        %v1680 = vpack.c.b16 %v1627, %v1626
        %v1681 = vpack.c.b16 %v1629, %v1628
        %v1682 = vpack.c.b16 %v1631, %v1630
        %v1683 = vpack.c.b16 %v1633, %v1632
        %v1684 = vpack.c.b16 %v1635, %v1634
        %v1685 = vpack.c.b16 %v1637, %v1636
        %v1686 = vpack.c.b16 %v1639, %v1638
        %v1687 = vpack.c.b16 %v1641, %v1640
        %v1688 = vpack.c.b16 %v1643, %v1642
        %v1689 = vpack.c.b16 %v1645, %v1644
        %v1690 = vpack.c.b16 %v1647, %v1646
        %v1691 = vpack.c.b16 %v1649, %v1648
        %v1692 = vpack.c.b16 %v1651, %v1650
        %v1693 = vpack.c.b16 %v1653, %v1652
        %v1694 = vpack.c.b16 %v1655, %v1654
        %v1695 = vpack.c.b16 %v1657, %v1656
        %v1696 = vpack.c.b16 %v1659, %v1658
        %v1697 = vpack.c.b16 %v1661, %v1660
        %v1698 = vpack.c.b16 %v1663, %v1662
        %v1699 = vpack.c.b16 %v1665, %v1664
        %v1700 = vpack.c.b16 %v1667, %v1666
        %v1701 = vpack.c.b16 %v1669, %v1668
        %1734 = vst [vmem:[%s315] sm:$0xff] %v1670
        %1735 = vst [vmem:[%s315 + $0x8] sm:$0xff] %v1671
        %1736 = vst [vmem:[%s315 + $0x10] sm:$0xff] %v1672
        %1737 = vst [vmem:[%s315 + $0x18] sm:$0xff] %v1673
        %1738 = vst [vmem:[%s315 + $0x20] sm:$0xff] %v1674
        %1739 = vst [vmem:[%s315 + $0x28] sm:$0xff] %v1675
        %1740 = vst [vmem:[%s315 + $0x30] sm:$0xff] %v1676
        %1741 = vst [vmem:[%s315 + $0x38] sm:$0xff] %v1677
        %1742 = vst [vmem:[%s315 + $0x40] sm:$0xff] %v1678
        %1743 = vst [vmem:[%s315 + $0x48] sm:$0xff] %v1679
        %1744 = vst [vmem:[%s315 + $0x50] sm:$0xff] %v1680
        %1745 = vst [vmem:[%s315 + $0x58] sm:$0xff] %v1681
        %1746 = vst [vmem:[%s315 + $0x60] sm:$0xff] %v1682
        %1747 = vst [vmem:[%s315 + $0x68] sm:$0xff] %v1683
        %1748 = vst [vmem:[%s315 + $0x70] sm:$0xff] %v1684
        %1749 = vst [vmem:[%s315 + $0x78] sm:$0xff] %v1685
        %1750 = vst [vmem:[%s315 + $0x80] sm:$0xff] %v1686
        %1751 = vst [vmem:[%s315 + $0x88] sm:$0xff] %v1687
        %1752 = vst [vmem:[%s315 + $0x90] sm:$0xff] %v1688
        %1753 = vst [vmem:[%s315 + $0x98] sm:$0xff] %v1689
        %1754 = vst [vmem:[%s315 + $0xa0] sm:$0xff] %v1690
        %1755 = vst [vmem:[%s315 + $0xa8] sm:$0xff] %v1691
        %1756 = vst [vmem:[%s315 + $0xb0] sm:$0xff] %v1692
        %1757 = vst [vmem:[%s315 + $0xb8] sm:$0xff] %v1693
        %1758 = vst [vmem:[%s315 + $0xc0] sm:$0xff] %v1694
        %1759 = vst [vmem:[%s315 + $0xc8] sm:$0xff] %v1695
        %1760 = vst [vmem:[%s315 + $0xd0] sm:$0xff] %v1696
        %1761 = vst [vmem:[%s315 + $0xd8] sm:$0xff] %v1697
        %1762 = vst [vmem:[%s315 + $0xe0] sm:$0xff] %v1698
        %1763 = vst [vmem:[%s315 + $0xe8] sm:$0xff] %v1699
        %1764 = vst [vmem:[%s315 + $0xf0] sm:$0xff] %v1700
        %1765 = vst [vmem:[%s315 + $0xf8] sm:$0xff] %v1701
        %v1766 = vpack.c.bf16 %v1195, %v1191
        %v1767 = vpack.c.bf16 %v1197, %v1193
        %v1768 = vpack.c.bf16 %v1205, %v1201
        %v1769 = vpack.c.bf16 %v1207, %v1203
        %v1770 = vpack.c.bf16 %v1215, %v1211
        %v1771 = vpack.c.bf16 %v1217, %v1213
        %v1772 = vpack.c.bf16 %v1225, %v1221
        %v1773 = vpack.c.bf16 %v1227, %v1223
        %v1774 = vpack.c.bf16 %v1235, %v1231
        %v1775 = vpack.c.bf16 %v1237, %v1233
        %v1776 = vpack.c.bf16 %v1245, %v1241
        %v1777 = vpack.c.bf16 %v1247, %v1243
        %v1778 = vpack.c.bf16 %v1255, %v1251
        %v1779 = vpack.c.bf16 %v1257, %v1253
        %v1780 = vpack.c.bf16 %v1265, %v1261
        %v1781 = vpack.c.bf16 %v1267, %v1263
        %v1782 = vpack.c.bf16 %v1275, %v1271
        %v1783 = vpack.c.bf16 %v1277, %v1273
        %v1784 = vpack.c.bf16 %v1285, %v1281
        %v1785 = vpack.c.bf16 %v1287, %v1283
        %v1786 = vpack.c.bf16 %v1295, %v1291
        %v1787 = vpack.c.bf16 %v1297, %v1293
        %v1788 = vpack.c.bf16 %v1305, %v1301
        %v1789 = vpack.c.bf16 %v1307, %v1303
        %v1790 = vpack.c.bf16 %v1315, %v1311
        %v1791 = vpack.c.bf16 %v1317, %v1313
        %v1792 = vpack.c.bf16 %v1325, %v1321
        %v1793 = vpack.c.bf16 %v1327, %v1323
        %v1794 = vpack.c.bf16 %v1335, %v1331
        %v1795 = vpack.c.bf16 %v1337, %v1333
        %v1796 = vpack.c.bf16 %v1345, %v1341
        %v1797 = vpack.c.bf16 %v1347, %v1343
        %v1830 = vunpack.c.l.b16 %v1766
        %v1831 = vunpack.c.l.b16 %v1767
        %v1832 = vunpack.c.h.b16 %v1766
        %v1833 = vunpack.c.h.b16 %v1767
        %v1834 = vunpack.c.l.b16 %v1768
        %v1835 = vunpack.c.l.b16 %v1769
        %v1836 = vunpack.c.h.b16 %v1768
        %v1837 = vunpack.c.h.b16 %v1769
        %v1838 = vunpack.c.l.b16 %v1770
        %v1839 = vunpack.c.l.b16 %v1771
        %v1840 = vunpack.c.h.b16 %v1770
        %v1841 = vunpack.c.h.b16 %v1771
        %v1842 = vunpack.c.l.b16 %v1772
        %v1843 = vunpack.c.l.b16 %v1773
        %v1844 = vunpack.c.h.b16 %v1772
        %v1845 = vunpack.c.h.b16 %v1773
        %v1846 = vunpack.c.l.b16 %v1774
        %v1847 = vunpack.c.l.b16 %v1775
        %v1848 = vunpack.c.h.b16 %v1774
        %v1849 = vunpack.c.h.b16 %v1775
        %v1850 = vunpack.c.l.b16 %v1776
        %v1851 = vunpack.c.l.b16 %v1777
        %v1852 = vunpack.c.h.b16 %v1776
        %v1853 = vunpack.c.h.b16 %v1777
        %v1854 = vunpack.c.l.b16 %v1778
        %v1855 = vunpack.c.l.b16 %v1779
        %v1856 = vunpack.c.h.b16 %v1778
        %v1857 = vunpack.c.h.b16 %v1779
        %v1858 = vunpack.c.l.b16 %v1780
        %v1859 = vunpack.c.l.b16 %v1781
        %v1860 = vunpack.c.h.b16 %v1780
        %v1861 = vunpack.c.h.b16 %v1781
        %v1862 = vunpack.c.l.b16 %v1782
        %v1863 = vunpack.c.l.b16 %v1783
        %v1864 = vunpack.c.h.b16 %v1782
        %v1865 = vunpack.c.h.b16 %v1783
        %v1866 = vunpack.c.l.b16 %v1784
        %v1867 = vunpack.c.l.b16 %v1785
        %v1868 = vunpack.c.h.b16 %v1784
        %v1869 = vunpack.c.h.b16 %v1785
        %v1870 = vunpack.c.l.b16 %v1786
        %v1871 = vunpack.c.l.b16 %v1787
        %v1872 = vunpack.c.h.b16 %v1786
        %v1873 = vunpack.c.h.b16 %v1787
        %v1874 = vunpack.c.l.b16 %v1788
        %v1875 = vunpack.c.l.b16 %v1789
        %v1876 = vunpack.c.h.b16 %v1788
        %v1877 = vunpack.c.h.b16 %v1789
        %v1878 = vunpack.c.l.b16 %v1790
        %v1879 = vunpack.c.l.b16 %v1791
        %v1880 = vunpack.c.h.b16 %v1790
        %v1881 = vunpack.c.h.b16 %v1791
        %v1882 = vunpack.c.l.b16 %v1792
        %v1883 = vunpack.c.l.b16 %v1793
        %v1884 = vunpack.c.h.b16 %v1792
        %v1885 = vunpack.c.h.b16 %v1793
        %v1886 = vunpack.c.l.b16 %v1794
        %v1887 = vunpack.c.l.b16 %v1795
        %v1888 = vunpack.c.h.b16 %v1794
        %v1889 = vunpack.c.h.b16 %v1795
        %v1890 = vunpack.c.l.b16 %v1796
        %v1891 = vunpack.c.l.b16 %v1797
        %v1892 = vunpack.c.h.b16 %v1796
        %v1893 = vunpack.c.h.b16 %v1797
        %v1894 = vpack.c.b16 %v1831, %v1830
        %v1895 = vpack.c.b16 %v1833, %v1832
        %v1896 = vpack.c.b16 %v1835, %v1834
        %v1897 = vpack.c.b16 %v1837, %v1836
        %v1898 = vpack.c.b16 %v1839, %v1838
        %v1899 = vpack.c.b16 %v1841, %v1840
        %v1900 = vpack.c.b16 %v1843, %v1842
        %v1901 = vpack.c.b16 %v1845, %v1844
        %v1902 = vpack.c.b16 %v1847, %v1846
        %v1903 = vpack.c.b16 %v1849, %v1848
        %v1904 = vpack.c.b16 %v1851, %v1850
        %v1905 = vpack.c.b16 %v1853, %v1852
        %v1906 = vpack.c.b16 %v1855, %v1854
        %v1907 = vpack.c.b16 %v1857, %v1856
        %v1908 = vpack.c.b16 %v1859, %v1858
        %v1909 = vpack.c.b16 %v1861, %v1860
        %v1910 = vpack.c.b16 %v1863, %v1862
        %v1911 = vpack.c.b16 %v1865, %v1864
        %v1912 = vpack.c.b16 %v1867, %v1866
        %v1913 = vpack.c.b16 %v1869, %v1868
        %v1914 = vpack.c.b16 %v1871, %v1870
        %v1915 = vpack.c.b16 %v1873, %v1872
        %v1916 = vpack.c.b16 %v1875, %v1874
        %v1917 = vpack.c.b16 %v1877, %v1876
        %v1918 = vpack.c.b16 %v1879, %v1878
        %v1919 = vpack.c.b16 %v1881, %v1880
        %v1920 = vpack.c.b16 %v1883, %v1882
        %v1921 = vpack.c.b16 %v1885, %v1884
        %v1922 = vpack.c.b16 %v1887, %v1886
        %v1923 = vpack.c.b16 %v1889, %v1888
        %v1924 = vpack.c.b16 %v1891, %v1890
        %v1925 = vpack.c.b16 %v1893, %v1892
        %1958 = vst [vmem:[%s322] sm:$0xff] %v1894
        %1959 = vst [vmem:[%s322 + $0x8] sm:$0xff] %v1895
        %1960 = vst [vmem:[%s322 + $0x10] sm:$0xff] %v1896
        %1961 = vst [vmem:[%s322 + $0x18] sm:$0xff] %v1897
        %1962 = vst [vmem:[%s322 + $0x20] sm:$0xff] %v1898
        %1963 = vst [vmem:[%s322 + $0x28] sm:$0xff] %v1899
        %1964 = vst [vmem:[%s322 + $0x30] sm:$0xff] %v1900
        %1965 = vst [vmem:[%s322 + $0x38] sm:$0xff] %v1901
        %1966 = vst [vmem:[%s322 + $0x40] sm:$0xff] %v1902
        %1967 = vst [vmem:[%s322 + $0x48] sm:$0xff] %v1903
        %1968 = vst [vmem:[%s322 + $0x50] sm:$0xff] %v1904
        %1969 = vst [vmem:[%s322 + $0x58] sm:$0xff] %v1905
        %1970 = vst [vmem:[%s322 + $0x60] sm:$0xff] %v1906
        %1971 = vst [vmem:[%s322 + $0x68] sm:$0xff] %v1907
        %1972 = vst [vmem:[%s322 + $0x70] sm:$0xff] %v1908
        %1973 = vst [vmem:[%s322 + $0x78] sm:$0xff] %v1909
        %1974 = vst [vmem:[%s322 + $0x80] sm:$0xff] %v1910
        %1975 = vst [vmem:[%s322 + $0x88] sm:$0xff] %v1911
        %1976 = vst [vmem:[%s322 + $0x90] sm:$0xff] %v1912
        %1977 = vst [vmem:[%s322 + $0x98] sm:$0xff] %v1913
        %1978 = vst [vmem:[%s322 + $0xa0] sm:$0xff] %v1914
        %1979 = vst [vmem:[%s322 + $0xa8] sm:$0xff] %v1915
        %1980 = vst [vmem:[%s322 + $0xb0] sm:$0xff] %v1916
        %1981 = vst [vmem:[%s322 + $0xb8] sm:$0xff] %v1917
        %1982 = vst [vmem:[%s322 + $0xc0] sm:$0xff] %v1918
        %1983 = vst [vmem:[%s322 + $0xc8] sm:$0xff] %v1919
        %1984 = vst [vmem:[%s322 + $0xd0] sm:$0xff] %v1920
        %1985 = vst [vmem:[%s322 + $0xd8] sm:$0xff] %v1921
        %1986 = vst [vmem:[%s322 + $0xe0] sm:$0xff] %v1922
        %1987 = vst [vmem:[%s322 + $0xe8] sm:$0xff] %v1923
        %1988 = vst [vmem:[%s322 + $0xf0] sm:$0xff] %v1924
        %1989 = vst [vmem:[%s322 + $0xf8] sm:$0xff] %v1925
        %v1990 = vpack.c.bf16 %v1388, %v1384
        %v1991 = vpack.c.bf16 %v1390, %v1386
        %v1992 = vpack.c.bf16 %v1398, %v1394
        %v1993 = vpack.c.bf16 %v1400, %v1396
        %v1994 = vpack.c.bf16 %v1408, %v1404
        %v1995 = vpack.c.bf16 %v1410, %v1406
        %v1996 = vpack.c.bf16 %v1418, %v1414
        %v1997 = vpack.c.bf16 %v1420, %v1416
        %v1998 = vpack.c.bf16 %v1428, %v1424
        %v1999 = vpack.c.bf16 %v1430, %v1426
        %v2000 = vpack.c.bf16 %v1438, %v1434
        %v2001 = vpack.c.bf16 %v1440, %v1436
        %v2002 = vpack.c.bf16 %v1448, %v1444
        %v2003 = vpack.c.bf16 %v1450, %v1446
        %v2004 = vpack.c.bf16 %v1458, %v1454
        %v2005 = vpack.c.bf16 %v1460, %v1456
        %v2006 = vpack.c.bf16 %v1468, %v1464
        %v2007 = vpack.c.bf16 %v1470, %v1466
        %v2008 = vpack.c.bf16 %v1478, %v1474
        %v2009 = vpack.c.bf16 %v1480, %v1476
        %v2010 = vpack.c.bf16 %v1488, %v1484
        %v2011 = vpack.c.bf16 %v1490, %v1486
        %v2012 = vpack.c.bf16 %v1498, %v1494
        %v2013 = vpack.c.bf16 %v1500, %v1496
        %v2014 = vpack.c.bf16 %v1508, %v1504
        %v2015 = vpack.c.bf16 %v1510, %v1506
        %v2016 = vpack.c.bf16 %v1518, %v1514
        %v2017 = vpack.c.bf16 %v1520, %v1516
        %v2018 = vpack.c.bf16 %v1528, %v1524
        %v2019 = vpack.c.bf16 %v1530, %v1526
        %v2020 = vpack.c.bf16 %v1538, %v1534
        %v2021 = vpack.c.bf16 %v1540, %v1536
        %v2054 = vunpack.c.l.b16 %v1990
        %v2055 = vunpack.c.l.b16 %v1991
        %v2056 = vunpack.c.h.b16 %v1990
        %v2057 = vunpack.c.h.b16 %v1991
        %v2058 = vunpack.c.l.b16 %v1992
        %v2059 = vunpack.c.l.b16 %v1993
        %v2060 = vunpack.c.h.b16 %v1992
        %v2061 = vunpack.c.h.b16 %v1993
        %v2062 = vunpack.c.l.b16 %v1994
        %v2063 = vunpack.c.l.b16 %v1995
        %v2064 = vunpack.c.h.b16 %v1994
        %v2065 = vunpack.c.h.b16 %v1995
        %v2066 = vunpack.c.l.b16 %v1996
        %v2067 = vunpack.c.l.b16 %v1997
        %v2068 = vunpack.c.h.b16 %v1996
        %v2069 = vunpack.c.h.b16 %v1997
        %v2070 = vunpack.c.l.b16 %v1998
        %v2071 = vunpack.c.l.b16 %v1999
        %v2072 = vunpack.c.h.b16 %v1998
        %v2073 = vunpack.c.h.b16 %v1999
        %v2074 = vunpack.c.l.b16 %v2000
        %v2075 = vunpack.c.l.b16 %v2001
        %v2076 = vunpack.c.h.b16 %v2000
        %v2077 = vunpack.c.h.b16 %v2001
        %v2078 = vunpack.c.l.b16 %v2002
        %v2079 = vunpack.c.l.b16 %v2003
        %v2080 = vunpack.c.h.b16 %v2002
        %v2081 = vunpack.c.h.b16 %v2003
        %v2082 = vunpack.c.l.b16 %v2004
        %v2083 = vunpack.c.l.b16 %v2005
        %v2084 = vunpack.c.h.b16 %v2004
        %v2085 = vunpack.c.h.b16 %v2005
        %v2086 = vunpack.c.l.b16 %v2006
        %v2087 = vunpack.c.l.b16 %v2007
        %v2088 = vunpack.c.h.b16 %v2006
        %v2089 = vunpack.c.h.b16 %v2007
        %v2090 = vunpack.c.l.b16 %v2008
        %v2091 = vunpack.c.l.b16 %v2009
        %v2092 = vunpack.c.h.b16 %v2008
        %v2093 = vunpack.c.h.b16 %v2009
        %v2094 = vunpack.c.l.b16 %v2010
        %v2095 = vunpack.c.l.b16 %v2011
        %v2096 = vunpack.c.h.b16 %v2010
        %v2097 = vunpack.c.h.b16 %v2011
        %v2098 = vunpack.c.l.b16 %v2012
        %v2099 = vunpack.c.l.b16 %v2013
        %v2100 = vunpack.c.h.b16 %v2012
        %v2101 = vunpack.c.h.b16 %v2013
        %v2102 = vunpack.c.l.b16 %v2014
        %v2103 = vunpack.c.l.b16 %v2015
        %v2104 = vunpack.c.h.b16 %v2014
        %v2105 = vunpack.c.h.b16 %v2015
        %v2106 = vunpack.c.l.b16 %v2016
        %v2107 = vunpack.c.l.b16 %v2017
        %v2108 = vunpack.c.h.b16 %v2016
        %v2109 = vunpack.c.h.b16 %v2017
        %v2110 = vunpack.c.l.b16 %v2018
        %v2111 = vunpack.c.l.b16 %v2019
        %v2112 = vunpack.c.h.b16 %v2018
        %v2113 = vunpack.c.h.b16 %v2019
        %v2114 = vunpack.c.l.b16 %v2020
        %v2115 = vunpack.c.l.b16 %v2021
        %v2116 = vunpack.c.h.b16 %v2020
        %v2117 = vunpack.c.h.b16 %v2021
        %v2118 = vpack.c.b16 %v2055, %v2054
        %v2119 = vpack.c.b16 %v2057, %v2056
        %v2120 = vpack.c.b16 %v2059, %v2058
        %v2121 = vpack.c.b16 %v2061, %v2060
        %v2122 = vpack.c.b16 %v2063, %v2062
        %v2123 = vpack.c.b16 %v2065, %v2064
        %v2124 = vpack.c.b16 %v2067, %v2066
        %v2125 = vpack.c.b16 %v2069, %v2068
        %v2126 = vpack.c.b16 %v2071, %v2070
        %v2127 = vpack.c.b16 %v2073, %v2072
        %v2128 = vpack.c.b16 %v2075, %v2074
        %v2129 = vpack.c.b16 %v2077, %v2076
        %v2130 = vpack.c.b16 %v2079, %v2078
        %v2131 = vpack.c.b16 %v2081, %v2080
        %v2132 = vpack.c.b16 %v2083, %v2082
        %v2133 = vpack.c.b16 %v2085, %v2084
        %v2134 = vpack.c.b16 %v2087, %v2086
        %v2135 = vpack.c.b16 %v2089, %v2088
        %v2136 = vpack.c.b16 %v2091, %v2090
        %v2137 = vpack.c.b16 %v2093, %v2092
        %v2138 = vpack.c.b16 %v2095, %v2094
        %v2139 = vpack.c.b16 %v2097, %v2096
        %v2140 = vpack.c.b16 %v2099, %v2098
        %v2141 = vpack.c.b16 %v2101, %v2100
        %v2142 = vpack.c.b16 %v2103, %v2102
        %v2143 = vpack.c.b16 %v2105, %v2104
        %v2144 = vpack.c.b16 %v2107, %v2106
        %v2145 = vpack.c.b16 %v2109, %v2108
        %v2146 = vpack.c.b16 %v2111, %v2110
        %v2147 = vpack.c.b16 %v2113, %v2112
        %v2148 = vpack.c.b16 %v2115, %v2114
        %v2149 = vpack.c.b16 %v2117, %v2116
        %2182 = vst [vmem:[%s329] sm:$0xff] %v2118
        %2183 = vst [vmem:[%s329 + $0x8] sm:$0xff] %v2119
        %2184 = vst [vmem:[%s329 + $0x10] sm:$0xff] %v2120
        %2185 = vst [vmem:[%s329 + $0x18] sm:$0xff] %v2121
        %2186 = vst [vmem:[%s329 + $0x20] sm:$0xff] %v2122
        %2187 = vst [vmem:[%s329 + $0x28] sm:$0xff] %v2123
        %2188 = vst [vmem:[%s329 + $0x30] sm:$0xff] %v2124
        %2189 = vst [vmem:[%s329 + $0x38] sm:$0xff] %v2125
        %2190 = vst [vmem:[%s329 + $0x40] sm:$0xff] %v2126
        %2191 = vst [vmem:[%s329 + $0x48] sm:$0xff] %v2127
        %2192 = vst [vmem:[%s329 + $0x50] sm:$0xff] %v2128
        %2193 = vst [vmem:[%s329 + $0x58] sm:$0xff] %v2129
        %2194 = vst [vmem:[%s329 + $0x60] sm:$0xff] %v2130
        %2195 = vst [vmem:[%s329 + $0x68] sm:$0xff] %v2131
        %2196 = vst [vmem:[%s329 + $0x70] sm:$0xff] %v2132
        %2197 = vst [vmem:[%s329 + $0x78] sm:$0xff] %v2133
        %2198 = vst [vmem:[%s329 + $0x80] sm:$0xff] %v2134
        %2199 = vst [vmem:[%s329 + $0x88] sm:$0xff] %v2135
        %2200 = vst [vmem:[%s329 + $0x90] sm:$0xff] %v2136
        %2201 = vst [vmem:[%s329 + $0x98] sm:$0xff] %v2137
        %2202 = vst [vmem:[%s329 + $0xa0] sm:$0xff] %v2138
        %2203 = vst [vmem:[%s329 + $0xa8] sm:$0xff] %v2139
        %2204 = vst [vmem:[%s329 + $0xb0] sm:$0xff] %v2140
        %2205 = vst [vmem:[%s329 + $0xb8] sm:$0xff] %v2141
        %2206 = vst [vmem:[%s329 + $0xc0] sm:$0xff] %v2142
        %2207 = vst [vmem:[%s329 + $0xc8] sm:$0xff] %v2143
        %2208 = vst [vmem:[%s329 + $0xd0] sm:$0xff] %v2144
        %2209 = vst [vmem:[%s329 + $0xd8] sm:$0xff] %v2145
        %2210 = vst [vmem:[%s329 + $0xe0] sm:$0xff] %v2146
        %2211 = vst [vmem:[%s329 + $0xe8] sm:$0xff] %v2147
        %2212 = vst [vmem:[%s329 + $0xf0] sm:$0xff] %v2148
        %2213 = vst [vmem:[%s329 + $0xf8] sm:$0xff] %v2149
        %s2214 = sand.u32 %s147, 1
        %s2215 = scalar_lea.sflag [#allocation4], %s2214
        %s2216 = sand.u32 %s147, 1
        %s2217 = smul.addr %s2216, 256
        %s2218 = scalar_lea.vmem [#allocation7], %s2217
        %s2219 = sand.u32 %s29, 1
        %s2220 = scalar_lea.sflag [#allocation9], %s2219
        %s2221 = sand.u32 %s173, 1
        %s2222 = smul.addr %s2221, 256
        %s2223 = scalar_lea.vmem [#allocation8], %s2222
        %s2224 = sand.u32 %s29, 1
        %s2225 = scalar_lea.sflag [#allocation9], %s2224
        %s2226 = sand.u32 %s199, 1
        %s2227 = smul.addr %s2226, 256
        %s2228 = scalar_lea.vmem [#allocation10], %s2227
        // Predicated region
        $region49: #{tpu_custom_call.1} parent=39 // pred_check
          %p2229 = pneg %p157
        $region50: #{tpu_custom_call.1} parent=39 // pred_check_branch
          %2231 = sbr.rel (%p2229) target = $region52
        $region51: #{tpu_custom_call.1} parent=39 // pred_region
          %s2233 = ssub.s32 4096, 4096
          %2234 = vsyncadd %s2215, %s2233
          %s2235 = smul.addr %s29, 64
          %s2236 = smul.addr %s2235, 64
          %s2237 = scalar_lea.hbm %s5, %s2236
          %s2238 = sshll.u32 %s2218, 4
          %s2239 = int_to_ptr.vmem [resolvable:$true] %s2238
          %2244 = dma.vmem_to_hbm [thread:$0]  %s2239, 4096, %s2237, %s2215, 128, 128, 8
        $region52: #{tpu_custom_call.1} parent=39 // pred_fallthru
          _
        // Predicated region
        $region53: #{tpu_custom_call.1} parent=39 // pred_check
          %p2245 = pneg %p183
        $region54: #{tpu_custom_call.1} parent=39 // pred_check_branch
          %2247 = sbr.rel (%p2245) target = $region56
        $region55: #{tpu_custom_call.1} parent=39 // pred_region
          %s2249 = ssub.s32 4096, 4096
          %2250 = vsyncadd %s2220, %s2249
          %s2251 = smul.addr %s29, 64
          %s2252 = smul.addr %s2251, 64
          %s2253 = scalar_lea.hbm %s6, %s2252
          %s2254 = sshll.u32 %s2223, 4
          %s2255 = int_to_ptr.vmem [resolvable:$true] %s2254
          %2260 = dma.vmem_to_hbm [thread:$0]  %s2255, 4096, %s2253, %s2220, 128, 128, 8
        $region56: #{tpu_custom_call.1} parent=39 // pred_fallthru
          _
        // Predicated region
        $region57: #{tpu_custom_call.1} parent=39 // pred_check
          %p2261 = pneg %p209
        $region58: #{tpu_custom_call.1} parent=39 // pred_check_branch
          %2263 = sbr.rel (%p2261) target = $region60
        $region59: #{tpu_custom_call.1} parent=39 // pred_region
          %s2265 = ssub.s32 4096, 4096
          %2266 = vsyncadd %s2225, %s2265
          %s2267 = smul.addr %s29, 64
          %s2268 = smul.addr %s2267, 64
          %s2269 = scalar_lea.hbm %s7, %s2268
          %s2270 = sshll.u32 %s2228, 4
          %s2271 = int_to_ptr.vmem [resolvable:$true] %s2270
          %2276 = dma.vmem_to_hbm [thread:$0]  %s2271, 4096, %s2269, %s2225, 128, 128, 8
        $region60: #{tpu_custom_call.1} parent=39 // pred_fallthru
          _
      $region40: #{tpu_custom_call.1} parent=5 // pred_fallthru
        _
      %p2277 = scmp.le.s32.totalorder 2, %s24
      // Predicated region
      $region61: #{tpu_custom_call.1} parent=5 // pred_check
        %p2278 = pneg %p2277
      $region62: #{tpu_custom_call.1} parent=5 // pred_check_branch
        %2280 = sbr.rel (%p2278) target = $region64
      $region63: #{tpu_custom_call.1} parent=5 // pred_region
        %s2281 = ssub.s32 %s24, 2
        // Predicated region
        $region65: #{tpu_custom_call.1} parent=63 // pred_check
          %p2282 = pneg %p163
        $region66: #{tpu_custom_call.1} parent=63 // pred_check_branch
          %2284 = sbr.rel (%p2282) target = $region68
        $region67: #{tpu_custom_call.1} parent=63 // pred_region
          %s2285 = sand.u32 %s148, 1
          %s2286 = scalar_lea.sflag [#allocation4], %s2285
          %s2287 = sand.u32 %s148, 1
          %s2288 = smul.addr %s2287, 256
          %s2289 = scalar_lea.vmem [#allocation7], %s2288
          %2290 = dma.done %s2286, 4096
        $region68: #{tpu_custom_call.1} parent=63 // pred_fallthru
          _
        // Predicated region
        $region69: #{tpu_custom_call.1} parent=63 // pred_check
          %p2291 = pneg %p189
        $region70: #{tpu_custom_call.1} parent=63 // pred_check_branch
          %2293 = sbr.rel (%p2291) target = $region72
        $region71: #{tpu_custom_call.1} parent=63 // pred_region
          %s2294 = sand.u32 %s30, 1
          %s2295 = scalar_lea.sflag [#allocation9], %s2294
          %s2296 = sand.u32 %s174, 1
          %s2297 = smul.addr %s2296, 256
          %s2298 = scalar_lea.vmem [#allocation8], %s2297
          %2299 = dma.done %s2295, 4096
        $region72: #{tpu_custom_call.1} parent=63 // pred_fallthru
          _
        // Predicated region
        $region73: #{tpu_custom_call.1} parent=63 // pred_check
          %p2300 = pneg %p215
        $region74: #{tpu_custom_call.1} parent=63 // pred_check_branch
          %2302 = sbr.rel (%p2300) target = $region76
        $region75: #{tpu_custom_call.1} parent=63 // pred_region
          %s2303 = sand.u32 %s30, 1
          %s2304 = scalar_lea.sflag [#allocation9], %s2303
          %s2305 = sand.u32 %s200, 1
          %s2306 = smul.addr %s2305, 256
          %s2307 = scalar_lea.vmem [#allocation10], %s2306
          %2308 = dma.done %s2304, 4096
        $region76: #{tpu_custom_call.1} parent=63 // pred_fallthru
          _
      $region64: #{tpu_custom_call.1} parent=5 // pred_fallthru
        _
    $region6: #{tpu_custom_call.1} parent=1 // loop_footer
      %s28 = sadd.s32 1, %s24
    $region7: #{tpu_custom_call.1} parent=1 // loop_footer_branch
      %23 = sbr.rel target = $region3
    $region8: #{tpu_custom_call.1} parent=1 // loop_exit
      _
    %2309 = vsyncpa [#allocation3], 1
    %s2310 = scalar_lea.sflag [#allocation3], 1
    %2311 = vsyncpa %s2310, 1
    %2312 = vsyncpa [#allocation6], 1
    %2313 = vsyncpa [#allocation4], 1
    %s2314 = scalar_lea.sflag [#allocation4], 1
    %2315 = vsyncpa %s2314, 1
    %2316 = vsyncpa [#allocation9], 1
    %s2317 = scalar_lea.sflag [#allocation9], 1
    %2318 = vsyncpa %s2317, 1

</llo_original>
